<compile_context>
chip_gen: v7x
topology: tpu7x:2x2x1
jax: 0.10.0
libtpu: 0.0.40
codegen_flags: <defaults>
</compile_context>

<pallas_src>
import functools

import jax
import jax.numpy as jnp
from jax.experimental import pallas as pl
from jax.experimental.pallas import tpu as pltpu

_SUB = 16  # sublane alignment that is safe for both f32 (8) and bf16 (16) row tiles


def _round_up(v, m):
    return (v + m - 1) // m * m


def attention_model_kernel(x_ref, aw_ref, w1_ref, b1_ref, w2_ref, b2_ref, o_ref):
    # x stored bf16 in HBM; all math in f32 (v5e has no bf16 VPU/EUP, dots acc in f32).
    x = x_ref[...].astype(jnp.float32)                                   # [tn, D]

    # attention_scores = x @ W_att ; softmax over the feature axis (dim=1).
    scores = jnp.dot(x, aw_ref[...], preferred_element_type=jnp.float32)  # [tn, A]
    scores = scores - jnp.max(scores, axis=1, keepdims=True)
    e = jnp.exp(scores)
    att = e * pl.reciprocal(jnp.sum(e, axis=1, keepdims=True), approx=True)

    # attended_features = x * attention_scores  (A == D elementwise).
    # Re-read x from VMEM so the pre-softmax value need not stay live in vregs.
    attended = x_ref[...].astype(jnp.float32) * att                       # [tn, D]

    # fc1 + relu
    h = jnp.dot(attended, w1_ref[...], preferred_element_type=jnp.float32) + b1_ref[...]
    h = jnp.maximum(h, 0.0)                                               # [tn, H]

    # fc2 (unpadded, narrow output; HBM writeback is the real [tn, O] bytes only)
    out = jnp.dot(h, w2_ref[...], preferred_element_type=jnp.float32) + b2_ref[...]
    o_ref[...] = out.astype(o_ref.dtype)                                  # [tn, O]


def attention_model_forward(x, w_att, w1, b1, w2, b2, *, tn=512):
    """x: [N, D]; w_att: [D, A]; w1: [D, H]; b1: [1|,H]; w2: [H, O]; b2: [1|,O]."""
    n, d = x.shape
    a = w_att.shape[1]
    h = w1.shape[1]
    o = w2.shape[1]
    assert a == d, "attention_dim must equal input_dim for x * softmax(x@W) to broadcast"

    # Row tile: multiple of 16 (bf16 sublane packing), clamped to the problem size,
    # and kept to >= 2 grid steps when possible so v7x's two TensorCores both get work.
    tn = max(_SUB, min(tn, _round_up(n, _SUB)))
    if n > _SUB and _round_up(n, tn) // tn < 2:
        tn = max(_SUB, _round_up((n + 1) // 2, _SUB))
    n_pad = _round_up(n, tn)
    grid = (n_pad // tn,)

    out_dtype = x.dtype
    f32 = jnp.float32

    # bf16 storage for the dominant HBM stream (x); math stays f32 inside the kernel.
    xb = x.astype(jnp.bfloat16)
    if n_pad != n:
        xb = jnp.zeros((n_pad, d), jnp.bfloat16).at[:n].set(xb)

    aw = w_att.astype(f32)
    w1f = w1.astype(f32)
    b1f = b1.astype(f32).reshape(1, h)
    w2f = w2.astype(f32)
    b2f = b2.astype(f32).reshape(1, o)

    out_pad = pl.pallas_call(
        attention_model_kernel,
        out_shape=jax.ShapeDtypeStruct((n_pad, o), out_dtype),
        grid_spec=pltpu.PrefetchScalarGridSpec(
            num_scalar_prefetch=0,
            grid=grid,
            in_specs=[
                pl.BlockSpec((tn, d), lambda i: (i, 0)),   # x row-tile (pipelined, bf16)
                pl.BlockSpec((d, a), lambda i: (0, 0)),    # attention weights (resident)
                pl.BlockSpec((d, h), lambda i: (0, 0)),    # fc1 weight (pre-transposed)
                pl.BlockSpec((1, h), lambda i: (0, 0)),    # fc1 bias
                pl.BlockSpec((h, o), lambda i: (0, 0)),    # fc2 weight (pre-transposed)
                pl.BlockSpec((1, o), lambda i: (0, 0)),    # fc2 bias
            ],
            out_specs=pl.BlockSpec((tn, o), lambda i: (i, 0)),  # unpadded [tn, O] writeback
        ),
        compiler_params=pltpu.CompilerParams(
            dimension_semantics=("parallel",)),
    )(xb, aw, w1f, b1f, w2f, b2f)

    # Drop row padding outside the kernel (cheap fused XLA slice); padded rows only
    # ever held garbage-but-finite values and are never reused.
    return out_pad[:n] if n_pad != n else out_pad


def reference_forward(x, w_att, w1, b1, w2, b2):
    scores = jax.nn.softmax(x @ w_att, axis=1)
    attended = x * scores
    hh = jax.nn.relu(attended @ w1 + b1)
    return hh @ w2 + b2


if __name__ == "__main__":
    # Shapes consistent with the module: input_dim == attention_dim (required by the
    # x * attention_scores broadcast), hidden_dim=16, output_dim=2.  N = graph nodes,
    # large enough that the row-tiled grid has >= 2 steps.
    N = 512
    INPUT_DIM = 16
    ATT_DIM = 16
    HIDDEN_DIM = 16
    OUTPUT_DIM = 2

    key = jax.random.PRNGKey(0)
    kx, ka, kw1, kb1, kw2, kb2 = jax.random.split(key, 6)

    x = jax.random.normal(kx, (N, INPUT_DIM), dtype=jnp.float32)

    # Deterministic parameter init (synthetic, mirrors nn.Parameter / nn.Linear shapes).
    w_att = jax.random.normal(ka, (INPUT_DIM, ATT_DIM), dtype=jnp.float32)
    # nn.Linear(input_dim, hidden_dim): weight [H, D] -> stored transposed [D, H]
    w1 = jax.random.normal(kw1, (INPUT_DIM, HIDDEN_DIM), dtype=jnp.float32) * 0.1
    b1 = jax.random.normal(kb1, (1, HIDDEN_DIM), dtype=jnp.float32) * 0.1
    # nn.Linear(hidden_dim, output_dim): weight [O, H] -> stored transposed [H, O]
    w2 = jax.random.normal(kw2, (HIDDEN_DIM, OUTPUT_DIM), dtype=jnp.float32) * 0.1
    b2 = jax.random.normal(kb2, (1, OUTPUT_DIM), dtype=jnp.float32) * 0.1

    # Jit the wrapper so the (no-op) weight casts / x bf16 cast are folded by XLA.
    fwd = jax.jit(functools.partial(attention_model_forward))
    out = fwd(x, w_att, w1, b1, w2, b2)
    out = jax.block_until_ready(out)

    ref = reference_forward(x, w_att, w1, b1, w2, b2)
    assert out.shape == (N, OUTPUT_DIM)
    # Tolerance accounts for bf16 storage of x and the approx (EUP) softmax reciprocal;
    # all accumulation inside the kernel is f32.
    assert jnp.allclose(out, ref, atol=2e-2, rtol=2e-2), "mismatch vs reference"

    print("KERNEL_OK")
</pallas_src>

<mosaic_0001>
module attributes {stable_mosaic.version = 11 : i64} {
  func.func @attention_model_kernel(%arg0: i32, %arg1: memref<256x16xbf16, #tpu.memory_space<vmem>>, %arg2: memref<16x16xf32, #tpu.memory_space<vmem>>, %arg3: memref<16x16xf32, #tpu.memory_space<vmem>>, %arg4: memref<1x16xf32, #tpu.memory_space<vmem>>, %arg5: memref<16x2xf32, #tpu.memory_space<vmem>>, %arg6: memref<1x2xf32, #tpu.memory_space<vmem>>, %arg7: memref<256x2xf32, #tpu.memory_space<vmem>>) attributes {dimension_semantics = [#tpu.dimension_semantics<parallel>], iteration_bounds = array<i64: 2>, scalar_prefetch = 0 : i64, scratch_operands = 0 : i64, tpu.core_type = #tpu.core_type<tc>, window_params = [{transform_indices = @transform_0, window_bounds = array<i64: 256, 16>}, {pipeline_mode = #tpu.pipeline_mode<synchronous>, transform_indices = @transform_1, window_bounds = array<i64: 16, 16>}, {pipeline_mode = #tpu.pipeline_mode<synchronous>, transform_indices = @transform_2, window_bounds = array<i64: 16, 16>}, {pipeline_mode = #tpu.pipeline_mode<synchronous>, transform_indices = @transform_3, window_bounds = array<i64: 1, 16>}, {pipeline_mode = #tpu.pipeline_mode<synchronous>, transform_indices = @transform_4, window_bounds = array<i64: 16, 2>}, {pipeline_mode = #tpu.pipeline_mode<synchronous>, transform_indices = @transform_5, window_bounds = array<i64: 1, 2>}, {transform_indices = @transform_6, window_bounds = array<i64: 256, 2>}]} {
    %c0 = arith.constant 0 : index
    %c0_0 = arith.constant 0 : index
    %0 = vector.load %arg1[%c0, %c0_0] : memref<256x16xbf16, #tpu.memory_space<vmem>>, vector<256x16xbf16>
    %1 = arith.extf %0 : vector<256x16xbf16> to vector<256x16xf32>
    %c0_1 = arith.constant 0 : index
    %c0_2 = arith.constant 0 : index
    %2 = vector.load %arg2[%c0_1, %c0_2] : memref<16x16xf32, #tpu.memory_space<vmem>>, vector<16x16xf32>
    %cst = arith.constant dense<0.000000e+00> : vector<256x16xf32>
    %3 = tpu.matmul %1, %2, %cst {dimension_numbers = #tpu.dot_dimension_numbers<[1], [0], [0], [1], [0, 0, 1, 1], [], []>} : vector<256x16xf32>, vector<16x16xf32>, vector<256x16xf32> -> vector<256x16xf32>
    %cst_3 = arith.constant dense<0xFF800000> : vector<256xf32>
    %4 = vector.multi_reduction <maximumf>, %3, %cst_3 [1] : vector<256x16xf32> to vector<256xf32>
    %5 = vector.shape_cast %4 : vector<256xf32> to vector<256x1xf32>
    %6 = vector.broadcast %5 : vector<256x1xf32> to vector<256x16xf32>
    %7 = arith.subf %3, %6 : vector<256x16xf32>
    %8 = math.exp %7 : vector<256x16xf32>
    %cst_4 = arith.constant dense<0.000000e+00> : vector<256xf32>
    %9 = vector.multi_reduction <add>, %8, %cst_4 [1] : vector<256x16xf32> to vector<256xf32>
    %10 = vector.shape_cast %9 : vector<256xf32> to vector<256x1xf32>
    %11 = tpu.reciprocal %10 {approx = true} : vector<256x1xf32> -> vector<256x1xf32>
    %12 = vector.broadcast %11 : vector<256x1xf32> to vector<256x16xf32>
    %13 = arith.mulf %8, %12 : vector<256x16xf32>
    %c0_5 = arith.constant 0 : index
    %c0_6 = arith.constant 0 : index
    %14 = vector.load %arg1[%c0_5, %c0_6] : memref<256x16xbf16, #tpu.memory_space<vmem>>, vector<256x16xbf16>
    %15 = arith.extf %14 : vector<256x16xbf16> to vector<256x16xf32>
    %16 = arith.mulf %15, %13 : vector<256x16xf32>
    %c0_7 = arith.constant 0 : index
    %c0_8 = arith.constant 0 : index
    %17 = vector.load %arg3[%c0_7, %c0_8] : memref<16x16xf32, #tpu.memory_space<vmem>>, vector<16x16xf32>
    %cst_9 = arith.constant dense<0.000000e+00> : vector<256x16xf32>
    %18 = tpu.matmul %16, %17, %cst_9 {dimension_numbers = #tpu.dot_dimension_numbers<[1], [0], [0], [1], [0, 0, 1, 1], [], []>} : vector<256x16xf32>, vector<16x16xf32>, vector<256x16xf32> -> vector<256x16xf32>
    %c0_10 = arith.constant 0 : index
    %c0_11 = arith.constant 0 : index
    %19 = vector.load %arg4[%c0_10, %c0_11] : memref<1x16xf32, #tpu.memory_space<vmem>>, vector<1x16xf32>
    %20 = vector.broadcast %19 : vector<1x16xf32> to vector<256x16xf32>
    %21 = arith.addf %18, %20 : vector<256x16xf32>
    %cst_12 = arith.constant 0.000000e+00 : f32
    %22 = vector.broadcast %cst_12 : f32 to vector<256x16xf32>
    %23 = arith.maximumf %21, %22 : vector<256x16xf32>
    %c0_13 = arith.constant 0 : index
    %c0_14 = arith.constant 0 : index
    %24 = vector.load %arg5[%c0_13, %c0_14] : memref<16x2xf32, #tpu.memory_space<vmem>>, vector<16x2xf32>
    %cst_15 = arith.constant dense<0.000000e+00> : vector<256x2xf32>
    %25 = tpu.matmul %23, %24, %cst_15 {dimension_numbers = #tpu.dot_dimension_numbers<[1], [0], [0], [1], [0, 0, 1, 1], [], []>} : vector<256x16xf32>, vector<16x2xf32>, vector<256x2xf32> -> vector<256x2xf32>
    %c0_16 = arith.constant 0 : index
    %c0_17 = arith.constant 0 : index
    %26 = vector.load %arg6[%c0_16, %c0_17] : memref<1x2xf32, #tpu.memory_space<vmem>>, vector<1x2xf32>
    %27 = vector.broadcast %26 : vector<1x2xf32> to vector<256x2xf32>
    %28 = arith.addf %25, %27 : vector<256x2xf32>
    %c0_18 = arith.constant 0 : index
    %c0_19 = arith.constant 0 : index
    %29 = vector.load %arg7[%c0_18, %c0_19] : memref<256x2xf32, #tpu.memory_space<vmem>>, vector<256x2xf32>
    tpu.vector_store %arg7[%c0_18, %c0_19], %28 {strides = array<i32>} : memref<256x2xf32, #tpu.memory_space<vmem>>, vector<256x2xf32>,
    return
  }
  func.func @transform_0(%arg0: i32) -> (i32, i32) {
    %c0_i32 = arith.constant 0 : i32
    %c0_i32_0 = arith.constant 0 : i32
    return %arg0, %c0_i32 : i32, i32
  }
  func.func @transform_1(%arg0: i32) -> (i32, i32) {
    %c0_i32 = arith.constant 0 : i32
    %c0_i32_0 = arith.constant 0 : i32
    %c0_i32_1 = arith.constant 0 : i32
    return %c0_i32, %c0_i32_0 : i32, i32
  }
  func.func @transform_2(%arg0: i32) -> (i32, i32) {
    %c0_i32 = arith.constant 0 : i32
    %c0_i32_0 = arith.constant 0 : i32
    %c0_i32_1 = arith.constant 0 : i32
    return %c0_i32, %c0_i32_0 : i32, i32
  }
  func.func @transform_3(%arg0: i32) -> (i32, i32) {
    %c0_i32 = arith.constant 0 : i32
    %c0_i32_0 = arith.constant 0 : i32
    %c0_i32_1 = arith.constant 0 : i32
    return %c0_i32, %c0_i32_0 : i32, i32
  }
  func.func @transform_4(%arg0: i32) -> (i32, i32) {
    %c0_i32 = arith.constant 0 : i32
    %c0_i32_0 = arith.constant 0 : i32
    %c0_i32_1 = arith.constant 0 : i32
    return %c0_i32, %c0_i32_0 : i32, i32
  }
  func.func @transform_5(%arg0: i32) -> (i32, i32) {
    %c0_i32 = arith.constant 0 : i32
    %c0_i32_0 = arith.constant 0 : i32
    %c0_i32_1 = arith.constant 0 : i32
    return %c0_i32, %c0_i32_0 : i32, i32
  }
  func.func @transform_6(%arg0: i32) -> (i32, i32) {
    %c0_i32 = arith.constant 0 : i32
    %c0_i32_0 = arith.constant 0 : i32
    return %arg0, %c0_i32 : i32, i32
  }
}

</mosaic_0001>

<llo_original>
// kernel: attention_model_forward.1
$region0: #{attention_model_forward.1}
  #allocation0 [shape = 'u32[]', space=smem, size = 0x4, offset = 0x4, fixed_abs, tag = 'smem constant byte address 0x4 - core index']
  #allocation1 [shape = 'u32[144,128]{1,0:T(1,128)}', space=vmem, size = 0x12000, scoped, tag = 'internal scratch']
  %s0 = inlined_call_operand.vmem [shape: bf16[512,16], index: 0, kind: input, shape index: {}]
  %s1 = inlined_call_operand.vmem [shape: f32[16,16], index: 1, kind: input, shape index: {}]
  %s2 = inlined_call_operand.vmem [shape: f32[16,16], index: 2, kind: input, shape index: {}]
  %s3 = inlined_call_operand.vmem [shape: f32[1,16], index: 3, kind: input, shape index: {}]
  %s4 = inlined_call_operand.vmem [shape: f32[16,2], index: 4, kind: input, shape index: {}]
  %s5 = inlined_call_operand.vmem [shape: f32[1,2], index: 5, kind: input, shape index: {}]
  %s6 = inlined_call_operand.vmem [shape: f32[512,2], index: 6, kind: output, shape index: {}]
  %s7 = sld [smem:[#allocation0]]
  $region57: #{attention_model_forward.1} parent=0
    _
  %s9 = ssub.s32 1, %s7
  %s10 = scalar_select 0, %s9, %s7
  loop: start=0, step=1, limit=4
  $region2: #{attention_model_forward.1} parent=0 // loop_pre_header
    _
  $region3: #{attention_model_forward.1} parent=0 // loop_header
    %s12 = sphi 0, %s16
    %p13 = scmp.ge.s32.totalorder %s12, 4
    %s22 = sphi 0, %s24
    %s25 = sphi 0, %s22
    %s26 = sphi 0, %s25
    %s42 = sphi 0, %s26
    %s46 = sphi 0, %s46
    %s48 = sphi 0, %s46
    %s49 = sphi 0, %s48
    %s63 = sphi 0, %s49
    %s67 = sphi 0, %s67
    %s69 = sphi 0, %s67
    %s70 = sphi 0, %s69
    %s84 = sphi 0, %s70
    %s88 = sphi 0, %s88
    %s90 = sphi 0, %s88
    %s91 = sphi 0, %s90
    %s105 = sphi 0, %s91
    %s109 = sphi 0, %s109
    %s111 = sphi 0, %s109
    %s112 = sphi 0, %s111
    %s126 = sphi 0, %s112
    %s130 = sphi 0, %s130
    %s132 = sphi 0, %s130
    %s133 = sphi 0, %s132
    %s147 = sphi 0, %s133
    %s153 = sphi 0, %s155
    %s156 = sphi 0, %s153
    %s157 = sphi 0, %s156
    %s173 = sphi 0, %s157
  $region4: #{attention_model_forward.1} parent=0 // loop_header_branch
    %15 = sbr.rel (%p13) target = $region8
  $region5: #{attention_model_forward.1} parent=0 // loop_body
    %s17 = ssub.s32 %s12, 1
    %s18 = ssub.s32 %s12, 2
    %s19 = sadd.s32 %s12, 1
    %s20 = ssub.s32 %s12, %s19
    %p21 = scmp.eq.s32.totalorder %s20, 0
    %s23 = sadd.s32 %s22, 1
    %s24 = scalar_select %p21, %s22, %s23
    %p27 = pneg %p21
    %p28 = scmp.eq.s32.totalorder %s12, 1
    %p29 = por %p27, %p28
    %p30 = scmp.ne.s32.totalorder %s22, %s25
    %p31 = scmp.eq.s32.totalorder %s12, 0
    %p32 = por %p30, %p31
    %p33 = scmp.ne.s32.totalorder %s22, %s25
    %p34 = scmp.eq.s32.totalorder %s17, 1
    %p35 = por %p33, %p34
    %p36 = scmp.ne.s32.totalorder %s25, %s26
    %p37 = scmp.eq.s32.totalorder %s17, 0
    %p38 = por %p36, %p37
    %p39 = scmp.ne.s32.totalorder %s25, %s26
    %p40 = scmp.eq.s32.totalorder %s18, 1
    %p41 = por %p39, %p40
    %p43 = scmp.ne.s32.totalorder %s26, %s42
    %p44 = scmp.eq.s32.totalorder %s18, 0
    %p45 = por %p43, %p44
    %s47 = sadd.s32 %s46, 1
    %p50 = scmp.eq.s32.totalorder %s12, 1
    %p51 = scmp.ne.s32.totalorder %s46, %s48
    %p52 = scmp.eq.s32.totalorder %s12, 0
    %p53 = por %p51, %p52
    %p54 = scmp.ne.s32.totalorder %s46, %s48
    %p55 = scmp.eq.s32.totalorder %s17, 1
    %p56 = por %p54, %p55
    %p57 = scmp.ne.s32.totalorder %s48, %s49
    %p58 = scmp.eq.s32.totalorder %s17, 0
    %p59 = por %p57, %p58
    %p60 = scmp.ne.s32.totalorder %s48, %s49
    %p61 = scmp.eq.s32.totalorder %s18, 1
    %p62 = por %p60, %p61
    %p64 = scmp.ne.s32.totalorder %s49, %s63
    %p65 = scmp.eq.s32.totalorder %s18, 0
    %p66 = por %p64, %p65
    %s68 = sadd.s32 %s67, 1
    %p71 = scmp.eq.s32.totalorder %s12, 1
    %p72 = scmp.ne.s32.totalorder %s67, %s69
    %p73 = scmp.eq.s32.totalorder %s12, 0
    %p74 = por %p72, %p73
    %p75 = scmp.ne.s32.totalorder %s67, %s69
    %p76 = scmp.eq.s32.totalorder %s17, 1
    %p77 = por %p75, %p76
    %p78 = scmp.ne.s32.totalorder %s69, %s70
    %p79 = scmp.eq.s32.totalorder %s17, 0
    %p80 = por %p78, %p79
    %p81 = scmp.ne.s32.totalorder %s69, %s70
    %p82 = scmp.eq.s32.totalorder %s18, 1
    %p83 = por %p81, %p82
    %p85 = scmp.ne.s32.totalorder %s70, %s84
    %p86 = scmp.eq.s32.totalorder %s18, 0
    %p87 = por %p85, %p86
    %s89 = sadd.s32 %s88, 1
    %p92 = scmp.eq.s32.totalorder %s12, 1
    %p93 = scmp.ne.s32.totalorder %s88, %s90
    %p94 = scmp.eq.s32.totalorder %s12, 0
    %p95 = por %p93, %p94
    %p96 = scmp.ne.s32.totalorder %s88, %s90
    %p97 = scmp.eq.s32.totalorder %s17, 1
    %p98 = por %p96, %p97
    %p99 = scmp.ne.s32.totalorder %s90, %s91
    %p100 = scmp.eq.s32.totalorder %s17, 0
    %p101 = por %p99, %p100
    %p102 = scmp.ne.s32.totalorder %s90, %s91
    %p103 = scmp.eq.s32.totalorder %s18, 1
    %p104 = por %p102, %p103
    %p106 = scmp.ne.s32.totalorder %s91, %s105
    %p107 = scmp.eq.s32.totalorder %s18, 0
    %p108 = por %p106, %p107
    %s110 = sadd.s32 %s109, 1
    %p113 = scmp.eq.s32.totalorder %s12, 1
    %p114 = scmp.ne.s32.totalorder %s109, %s111
    %p115 = scmp.eq.s32.totalorder %s12, 0
    %p116 = por %p114, %p115
    %p117 = scmp.ne.s32.totalorder %s109, %s111
    %p118 = scmp.eq.s32.totalorder %s17, 1
    %p119 = por %p117, %p118
    %p120 = scmp.ne.s32.totalorder %s111, %s112
    %p121 = scmp.eq.s32.totalorder %s17, 0
    %p122 = por %p120, %p121
    %p123 = scmp.ne.s32.totalorder %s111, %s112
    %p124 = scmp.eq.s32.totalorder %s18, 1
    %p125 = por %p123, %p124
    %p127 = scmp.ne.s32.totalorder %s112, %s126
    %p128 = scmp.eq.s32.totalorder %s18, 0
    %p129 = por %p127, %p128
    %s131 = sadd.s32 %s130, 1
    %p134 = scmp.eq.s32.totalorder %s12, 1
    %p135 = scmp.ne.s32.totalorder %s130, %s132
    %p136 = scmp.eq.s32.totalorder %s12, 0
    %p137 = por %p135, %p136
    %p138 = scmp.ne.s32.totalorder %s130, %s132
    %p139 = scmp.eq.s32.totalorder %s17, 1
    %p140 = por %p138, %p139
    %p141 = scmp.ne.s32.totalorder %s132, %s133
    %p142 = scmp.eq.s32.totalorder %s17, 0
    %p143 = por %p141, %p142
    %p144 = scmp.ne.s32.totalorder %s132, %s133
    %p145 = scmp.eq.s32.totalorder %s18, 1
    %p146 = por %p144, %p145
    %p148 = scmp.ne.s32.totalorder %s133, %s147
    %p149 = scmp.eq.s32.totalorder %s18, 0
    %p150 = por %p148, %p149
    %s151 = ssub.s32 %s12, %s19
    %p152 = scmp.eq.s32.totalorder %s151, 0
    %s154 = sadd.s32 %s153, 1
    %s155 = scalar_select %p152, %s153, %s154
    %p158 = pneg %p152
    %p159 = scmp.eq.s32.totalorder %s12, 1
    %p160 = por %p158, %p159
    %p161 = scmp.ne.s32.totalorder %s153, %s156
    %p162 = scmp.eq.s32.totalorder %s12, 0
    %p163 = por %p161, %p162
    %p164 = scmp.ne.s32.totalorder %s153, %s156
    %p165 = scmp.eq.s32.totalorder %s17, 1
    %p166 = por %p164, %p165
    %p167 = scmp.ne.s32.totalorder %s156, %s157
    %p168 = scmp.eq.s32.totalorder %s17, 0
    %p169 = por %p167, %p168
    %p170 = scmp.ne.s32.totalorder %s156, %s157
    %p171 = scmp.eq.s32.totalorder %s18, 1
    %p172 = por %p170, %p171
    %p174 = scmp.ne.s32.totalorder %s157, %s173
    %p175 = scmp.eq.s32.totalorder %s18, 0
    %p176 = por %p174, %p175
    %p177 = scmp.le.s32.totalorder 1, %s12
    %p178 = scmp.lt.s32.totalorder %s12, 3
    %p179 = pnand %p177, %p178
    %p180 = pneg %p179
    // Predicated region
    $region9: #{attention_model_forward.1} parent=5 // pred_check
      _
    $region10: #{attention_model_forward.1} parent=5 // pred_check_branch
      %182 = sbr.rel (%p179) target = $region12
    $region11: #{attention_model_forward.1} parent=5 // pred_region
      %s183 = ssub.s32 %s12, 1
      // Predicated region
      $region13: #{attention_model_forward.1} parent=11 // pred_check
        %p184 = pneg %p59
      $region14: #{attention_model_forward.1} parent=11 // pred_check_branch
        %186 = sbr.rel (%p184) target = $region16
      $region15: #{attention_model_forward.1} parent=11 // pred_region
        _
      $region16: #{attention_model_forward.1} parent=11 // pred_fallthru
        _
      // Predicated region
      $region17: #{attention_model_forward.1} parent=11 // pred_check
        %p187 = pneg %p80
      $region18: #{attention_model_forward.1} parent=11 // pred_check_branch
        %189 = sbr.rel (%p187) target = $region20
      $region19: #{attention_model_forward.1} parent=11 // pred_region
        _
      $region20: #{attention_model_forward.1} parent=11 // pred_fallthru
        _
      // Predicated region
      $region21: #{attention_model_forward.1} parent=11 // pred_check
        %p190 = pneg %p101
      $region22: #{attention_model_forward.1} parent=11 // pred_check_branch
        %192 = sbr.rel (%p190) target = $region24
      $region23: #{attention_model_forward.1} parent=11 // pred_region
        _
      $region24: #{attention_model_forward.1} parent=11 // pred_fallthru
        _
      // Predicated region
      $region25: #{attention_model_forward.1} parent=11 // pred_check
        %p193 = pneg %p122
      $region26: #{attention_model_forward.1} parent=11 // pred_check_branch
        %195 = sbr.rel (%p193) target = $region28
      $region27: #{attention_model_forward.1} parent=11 // pred_region
        _
      $region28: #{attention_model_forward.1} parent=11 // pred_fallthru
        _
      // Predicated region
      $region29: #{attention_model_forward.1} parent=11 // pred_check
        %p196 = pneg %p143
      $region30: #{attention_model_forward.1} parent=11 // pred_check_branch
        %198 = sbr.rel (%p196) target = $region32
      $region31: #{attention_model_forward.1} parent=11 // pred_region
        _
      $region32: #{attention_model_forward.1} parent=11 // pred_fallthru
        _
    $region12: #{attention_model_forward.1} parent=5 // pred_fallthru
      _
    %p199 = scmp.lt.s32.totalorder %s12, 2
    // Predicated region
    $region33: #{attention_model_forward.1} parent=5 // pred_check
      %p200 = pneg %p199
    $region34: #{attention_model_forward.1} parent=5 // pred_check_branch
      %202 = sbr.rel (%p200) target = $region36
    $region35: #{attention_model_forward.1} parent=5 // pred_region
      // Predicated region
      $region37: #{attention_model_forward.1} parent=35 // pred_check
        %p203 = pneg %p32
      $region38: #{attention_model_forward.1} parent=35 // pred_check_branch
        %205 = sbr.rel (%p203) target = $region40
      $region39: #{attention_model_forward.1} parent=35 // pred_region
        %s206 = smul.u32 32, %s12
        %p207 = scmp.lt.s32.totalorder %s206, 63
        %s208 = scalar_select %p207, %s206, 63
        %s209 = smul.addr %s208, 4
        %s210 = scalar_lea.vmem %s0, %s209
        %s211 = smul.u32 32, %s12
      $region40: #{attention_model_forward.1} parent=35 // pred_fallthru
        _
    $region36: #{attention_model_forward.1} parent=5 // pred_fallthru
      _
    %p212 = scmp.le.s32.totalorder 1, %s12
    %p213 = scmp.lt.s32.totalorder %s12, 3
    %p214 = pnand %p212, %p213
    %p215 = pneg %p214
    // Predicated region
    $region41: #{attention_model_forward.1} parent=5 // pred_check
      _
    $region42: #{attention_model_forward.1} parent=5 // pred_check_branch
      %217 = sbr.rel (%p214) target = $region44
    $region43: #{attention_model_forward.1} parent=5 // pred_region
      %s218 = ssub.s32 %s12, 1
      %s219 = smul.u32 32, %s17
      %p220 = scmp.lt.s32.totalorder %s219, 63
      %s221 = scalar_select %p220, %s219, 63
      %s222 = smul.addr %s221, 4
      %s223 = scalar_lea.vmem %s0, %s222
      %p224 = pneg %p38
      %p225 = pneg %p35
      %p226 = pneg %p59
      %p227 = pneg %p56
      %p228 = pneg %p80
      %p229 = pneg %p77
      %p230 = pneg %p101
      %p231 = pneg %p98
      %p232 = pneg %p122
      %p233 = pneg %p119
      %p234 = pneg %p143
      %p235 = pneg %p140
      %p236 = pneg %p169
      %p237 = pneg %p166
      %s238 = smul.u32 32, %s17
      %p239 = scmp.lt.s32.totalorder %s238, 63
      %s240 = scalar_select %p239, %s238, 63
      %s241 = smul.addr %s240, 8
      %s242 = scalar_lea.vmem %s6, %s241
      %s243 = smul.u32 32, %s17
      %p244 = scmp.lt.s32.totalorder %s243, 63
      %s245 = scalar_select %p244, %s243, 63
      %s246 = smul.addr %s245, 4
      %s247 = scalar_lea.vmem %s0, %s246
      %s248 = smul.u32 32, %s17
      %s249 = smul.u32 32, %s17
      %p250 = scmp.lt.s32.totalorder %s249, 63
      %s251 = scalar_select %p250, %s249, 63
      %s252 = smul.addr %s251, 8
      %s253 = scalar_lea.vmem %s6, %s252
      %s254 = smul.u32 32, %s17
      %v255 = vld [vmem:[%s247] sm:$0xf]
      %v256 = vld [vmem:[%s247 + $0x4] sm:$0xf]
      %v257 = vld [vmem:[%s247 + $0x8] sm:$0xf]
      %v258 = vld [vmem:[%s247 + $0xc] sm:$0xf]
      %v259 = vld [vmem:[%s247 + $0x10] sm:$0xf]
      %v260 = vld [vmem:[%s247 + $0x14] sm:$0xf]
      %v261 = vld [vmem:[%s247 + $0x18] sm:$0xf]
      %v262 = vld [vmem:[%s247 + $0x1c] sm:$0xf]
      %v263 = vld [vmem:[%s247 + $0x20] sm:$0xf]
      %v264 = vld [vmem:[%s247 + $0x24] sm:$0xf]
      %v265 = vld [vmem:[%s247 + $0x28] sm:$0xf]
      %v266 = vld [vmem:[%s247 + $0x2c] sm:$0xf]
      %v267 = vld [vmem:[%s247 + $0x30] sm:$0xf]
      %v268 = vld [vmem:[%s247 + $0x34] sm:$0xf]
      %v269 = vld [vmem:[%s247 + $0x38] sm:$0xf]
      %v270 = vld [vmem:[%s247 + $0x3c] sm:$0xf]
      %v271 = vld [vmem:[%s247 + $0x40] sm:$0xf]
      %v272 = vld [vmem:[%s247 + $0x44] sm:$0xf]
      %v273 = vld [vmem:[%s247 + $0x48] sm:$0xf]
      %v274 = vld [vmem:[%s247 + $0x4c] sm:$0xf]
      %v275 = vld [vmem:[%s247 + $0x50] sm:$0xf]
      %v276 = vld [vmem:[%s247 + $0x54] sm:$0xf]
      %v277 = vld [vmem:[%s247 + $0x58] sm:$0xf]
      %v278 = vld [vmem:[%s247 + $0x5c] sm:$0xf]
      %v279 = vld [vmem:[%s247 + $0x60] sm:$0xf]
      %v280 = vld [vmem:[%s247 + $0x64] sm:$0xf]
      %v281 = vld [vmem:[%s247 + $0x68] sm:$0xf]
      %v282 = vld [vmem:[%s247 + $0x6c] sm:$0xf]
      %v283 = vld [vmem:[%s247 + $0x70] sm:$0xf]
      %v284 = vld [vmem:[%s247 + $0x74] sm:$0xf]
      %v285 = vld [vmem:[%s247 + $0x78] sm:$0xf]
      %v286 = vld [vmem:[%s247 + $0x7c] sm:$0xf]
      %v287 = vunpack.c.l.bf16 %v255
      %v288 = vunpack.c.l.bf16 %v256
      %v289 = vunpack.c.l.bf16 %v257
      %v290 = vunpack.c.l.bf16 %v258
      %v291 = vunpack.c.l.bf16 %v259
      %v292 = vunpack.c.l.bf16 %v260
      %v293 = vunpack.c.l.bf16 %v261
      %v294 = vunpack.c.l.bf16 %v262
      %v295 = vunpack.c.l.bf16 %v263
      %v296 = vunpack.c.l.bf16 %v264
      %v297 = vunpack.c.l.bf16 %v265
      %v298 = vunpack.c.l.bf16 %v266
      %v299 = vunpack.c.l.bf16 %v267
      %v300 = vunpack.c.l.bf16 %v268
      %v301 = vunpack.c.l.bf16 %v269
      %v302 = vunpack.c.l.bf16 %v270
      %v303 = vunpack.c.l.bf16 %v271
      %v304 = vunpack.c.l.bf16 %v272
      %v305 = vunpack.c.l.bf16 %v273
      %v306 = vunpack.c.l.bf16 %v274
      %v307 = vunpack.c.l.bf16 %v275
      %v308 = vunpack.c.l.bf16 %v276
      %v309 = vunpack.c.l.bf16 %v277
      %v310 = vunpack.c.l.bf16 %v278
      %v311 = vunpack.c.l.bf16 %v279
      %v312 = vunpack.c.l.bf16 %v280
      %v313 = vunpack.c.l.bf16 %v281
      %v314 = vunpack.c.l.bf16 %v282
      %v315 = vunpack.c.l.bf16 %v283
      %v316 = vunpack.c.l.bf16 %v284
      %v317 = vunpack.c.l.bf16 %v285
      %v318 = vunpack.c.l.bf16 %v286
      %v319 = vld [vmem:[%s1] sm:$0xff]
      %v320 = vld [vmem:[%s1 + $0x8] sm:$0xff]
      %vm321 = vcmask 130048
      %v323 = vsel %vm321, %v287, 0
      %v326 = vsel %vm321, %v288, 0
      %v329 = vsel %vm321, %v289, 0
      %v332 = vsel %vm321, %v290, 0
      %v335 = vsel %vm321, %v291, 0
      %v338 = vsel %vm321, %v292, 0
      %v341 = vsel %vm321, %v293, 0
      %v344 = vsel %vm321, %v294, 0
      %v347 = vsel %vm321, %v295, 0
      %v350 = vsel %vm321, %v296, 0
      %v353 = vsel %vm321, %v297, 0
      %v356 = vsel %vm321, %v298, 0
      %v359 = vsel %vm321, %v299, 0
      %v362 = vsel %vm321, %v300, 0
      %v365 = vsel %vm321, %v301, 0
      %v368 = vsel %vm321, %v302, 0
      %v371 = vsel %vm321, %v303, 0
      %v374 = vsel %vm321, %v304, 0
      %v377 = vsel %vm321, %v305, 0
      %v380 = vsel %vm321, %v306, 0
      %v383 = vsel %vm321, %v307, 0
      %v386 = vsel %vm321, %v308, 0
      %v389 = vsel %vm321, %v309, 0
      %v392 = vsel %vm321, %v310, 0
      %v395 = vsel %vm321, %v311, 0
      %v398 = vsel %vm321, %v312, 0
      %v401 = vsel %vm321, %v313, 0
      %v404 = vsel %vm321, %v314, 0
      %v407 = vsel %vm321, %v315, 0
      %v410 = vsel %vm321, %v316, 0
      %v413 = vsel %vm321, %v317, 0
      %v416 = vsel %vm321, %v318, 0
      %418 = vmatprep.subr.mxu0 0.0
      %419 = vmatpush1.msra.mxu0 %v319
      %420 = vmatprep.subr.mxu0 0.0
      %421 = vmatpush1.msra.mxu0 %v320
      %422 = vmatprep.subr.mxu0 0.0
      %423 = vmatpush1.msra.mxu0 0.0
      %424 = vmatprep.subr.mxu0 0.0
      %425 = vmatpush1.msra.mxu0 0.0
      %426 = vmatprep.subr.mxu0 0.0
      %427 = vmatpush1.msra.mxu0 0.0
      %428 = vmatprep.subr.mxu0 0.0
      %429 = vmatpush1.msra.mxu0 0.0
      %430 = vmatprep.subr.mxu0 0.0
      %431 = vmatpush1.msra.mxu0 0.0
      %432 = vmatprep.subr.mxu0 0.0
      %433 = vmatpush1.msra.mxu0 0.0
      %434 = vmatprep.subr.mxu0 0.0
      %435 = vmatpush1.msra.mxu0 0.0
      %436 = vmatprep.subr.mxu0 0.0
      %437 = vmatpush1.msra.mxu0 0.0
      %438 = vmatprep.subr.mxu0 0.0
      %439 = vmatpush1.msra.mxu0 0.0
      %440 = vmatprep.subr.mxu0 0.0
      %441 = vmatpush1.msra.mxu0 0.0
      %442 = vmatprep.subr.mxu0 0.0
      %443 = vmatpush1.msra.mxu0 0.0
      %444 = vmatprep.subr.mxu0 0.0
      %445 = vmatpush1.msra.mxu0 0.0
      %446 = vmatprep.subr.mxu0 0.0
      %447 = vmatpush1.msra.mxu0 0.0
      %448 = vmatprep.subr.mxu0 0.0
      %449 = vmatpush1.msra.mxu0 0.0
      %450 = vmatprep.subr.mxu0 0.0
      %451 = vmatpush1.msra.mxu0 0.0
      %452 = vmatprep.subr.mxu0 0.0
      %453 = vmatpush1.msra.mxu0 0.0
      %454 = vmatprep.subr.mxu0 0.0
      %455 = vmatpush1.msra.mxu0 0.0
      %456 = vmatprep.subr.mxu0 0.0
      %457 = vmatpush1.msra.mxu0 0.0
      %458 = vmatprep.subr.mxu0 0.0
      %459 = vmatpush1.msra.mxu0 0.0
      %460 = vmatprep.subr.mxu0 0.0
      %461 = vmatpush1.msra.mxu0 0.0
      %462 = vmatprep.subr.mxu0 0.0
      %463 = vmatpush1.msra.mxu0 0.0
      %464 = vmatprep.subr.mxu0 0.0
      %465 = vmatpush1.msra.mxu0 0.0
      %466 = vmatprep.subr.mxu0 0.0
      %467 = vmatpush1.msra.mxu0 0.0
      %468 = vmatprep.subr.mxu0 0.0
      %469 = vmatpush1.msra.mxu0 0.0
      %470 = vmatprep.subr.mxu0 0.0
      %471 = vmatpush1.msra.mxu0 0.0
      %472 = vmatprep.subr.mxu0 0.0
      %473 = vmatpush1.msra.mxu0 0.0
      %474 = vmatprep.subr.mxu0 0.0
      %475 = vmatpush1.msra.mxu0 0.0
      %476 = vmatprep.subr.mxu0 0.0
      %477 = vmatpush1.msra.mxu0 0.0
      %478 = vmatprep.subr.mxu0 0.0
      %479 = vmatpush1.msra.mxu0 0.0
      %480 = vmatprep.subr.mxu0 0.0
      %481 = vmatpush1.msra.mxu0 0.0
      %482 = vmatprep.mubr.f32.mxu0 0.0
      %483 = vmatmul.mubr.f32.gmra.mrb[0].mxu0 %v323
      %v484 = vpop.f32.mrb[0].mxu0
      %v485 = vadd.f32 0.0, %v484
      %v486 = vpop.f32.mrb[0].mxu0
      %487 = vmatprep.mubr.f32.mxu0 0.0
      %488 = vmatmul.mubr.f32.gmra.mrb[0].mxu0 %v326
      %v489 = vpop.f32.mrb[0].mxu0
      %v490 = vadd.f32 0.0, %v489
      %v491 = vpop.f32.mrb[0].mxu0
      %492 = vmatprep.mubr.f32.mxu0 0.0
      %493 = vmatmul.mubr.f32.gmra.mrb[0].mxu0 %v329
      %v494 = vpop.f32.mrb[0].mxu0
      %v495 = vadd.f32 0.0, %v494
      %v496 = vpop.f32.mrb[0].mxu0
      %497 = vmatprep.mubr.f32.mxu0 0.0
      %498 = vmatmul.mubr.f32.gmra.mrb[0].mxu0 %v332
      %v499 = vpop.f32.mrb[0].mxu0
      %v500 = vadd.f32 0.0, %v499
      %v501 = vpop.f32.mrb[0].mxu0
      %502 = vmatprep.mubr.f32.mxu0 0.0
      %503 = vmatmul.mubr.f32.gmra.mrb[0].mxu0 %v335
      %v504 = vpop.f32.mrb[0].mxu0
      %v505 = vadd.f32 0.0, %v504
      %v506 = vpop.f32.mrb[0].mxu0
      %507 = vmatprep.mubr.f32.mxu0 0.0
      %508 = vmatmul.mubr.f32.gmra.mrb[0].mxu0 %v338
      %v509 = vpop.f32.mrb[0].mxu0
      %v510 = vadd.f32 0.0, %v509
      %v511 = vpop.f32.mrb[0].mxu0
      %512 = vmatprep.mubr.f32.mxu0 0.0
      %513 = vmatmul.mubr.f32.gmra.mrb[0].mxu0 %v341
      %v514 = vpop.f32.mrb[0].mxu0
      %v515 = vadd.f32 0.0, %v514
      %v516 = vpop.f32.mrb[0].mxu0
      %517 = vmatprep.mubr.f32.mxu0 0.0
      %518 = vmatmul.mubr.f32.gmra.mrb[0].mxu0 %v344
      %v519 = vpop.f32.mrb[0].mxu0
      %v520 = vadd.f32 0.0, %v519
      %v521 = vpop.f32.mrb[0].mxu0
      %522 = vmatprep.mubr.f32.mxu0 0.0
      %523 = vmatmul.mubr.f32.gmra.mrb[0].mxu0 %v347
      %v524 = vpop.f32.mrb[0].mxu0
      %v525 = vadd.f32 0.0, %v524
      %v526 = vpop.f32.mrb[0].mxu0
      %527 = vmatprep.mubr.f32.mxu0 0.0
      %528 = vmatmul.mubr.f32.gmra.mrb[0].mxu0 %v350
      %v529 = vpop.f32.mrb[0].mxu0
      %v530 = vadd.f32 0.0, %v529
      %v531 = vpop.f32.mrb[0].mxu0
      %532 = vmatprep.mubr.f32.mxu0 0.0
      %533 = vmatmul.mubr.f32.gmra.mrb[0].mxu0 %v353
      %v534 = vpop.f32.mrb[0].mxu0
      %v535 = vadd.f32 0.0, %v534
      %v536 = vpop.f32.mrb[0].mxu0
      %537 = vmatprep.mubr.f32.mxu0 0.0
      %538 = vmatmul.mubr.f32.gmra.mrb[0].mxu0 %v356
      %v539 = vpop.f32.mrb[0].mxu0
      %v540 = vadd.f32 0.0, %v539
      %v541 = vpop.f32.mrb[0].mxu0
      %542 = vmatprep.mubr.f32.mxu0 0.0
      %543 = vmatmul.mubr.f32.gmra.mrb[0].mxu0 %v359
      %v544 = vpop.f32.mrb[0].mxu0
      %v545 = vadd.f32 0.0, %v544
      %v546 = vpop.f32.mrb[0].mxu0
      %547 = vmatprep.mubr.f32.mxu0 0.0
      %548 = vmatmul.mubr.f32.gmra.mrb[0].mxu0 %v362
      %v549 = vpop.f32.mrb[0].mxu0
      %v550 = vadd.f32 0.0, %v549
      %v551 = vpop.f32.mrb[0].mxu0
      %552 = vmatprep.mubr.f32.mxu0 0.0
      %553 = vmatmul.mubr.f32.gmra.mrb[0].mxu0 %v365
      %v554 = vpop.f32.mrb[0].mxu0
      %v555 = vadd.f32 0.0, %v554
      %v556 = vpop.f32.mrb[0].mxu0
      %557 = vmatprep.mubr.f32.mxu0 0.0
      %558 = vmatmul.mubr.f32.gmra.mrb[0].mxu0 %v368
      %v559 = vpop.f32.mrb[0].mxu0
      %v560 = vadd.f32 0.0, %v559
      %v561 = vpop.f32.mrb[0].mxu0
      %562 = vmatprep.mubr.f32.mxu0 0.0
      %563 = vmatmul.mubr.f32.gmra.mrb[0].mxu0 %v371
      %v564 = vpop.f32.mrb[0].mxu0
      %v565 = vadd.f32 0.0, %v564
      %v566 = vpop.f32.mrb[0].mxu0
      %567 = vmatprep.mubr.f32.mxu0 0.0
      %568 = vmatmul.mubr.f32.gmra.mrb[0].mxu0 %v374
      %v569 = vpop.f32.mrb[0].mxu0
      %v570 = vadd.f32 0.0, %v569
      %v571 = vpop.f32.mrb[0].mxu0
      %572 = vmatprep.mubr.f32.mxu0 0.0
      %573 = vmatmul.mubr.f32.gmra.mrb[0].mxu0 %v377
      %v574 = vpop.f32.mrb[0].mxu0
      %v575 = vadd.f32 0.0, %v574
      %v576 = vpop.f32.mrb[0].mxu0
      %577 = vmatprep.mubr.f32.mxu0 0.0
      %578 = vmatmul.mubr.f32.gmra.mrb[0].mxu0 %v380
      %v579 = vpop.f32.mrb[0].mxu0
      %v580 = vadd.f32 0.0, %v579
      %v581 = vpop.f32.mrb[0].mxu0
      %582 = vmatprep.mubr.f32.mxu0 0.0
      %583 = vmatmul.mubr.f32.gmra.mrb[0].mxu0 %v383
      %v584 = vpop.f32.mrb[0].mxu0
      %v585 = vadd.f32 0.0, %v584
      %v586 = vpop.f32.mrb[0].mxu0
      %587 = vmatprep.mubr.f32.mxu0 0.0
      %588 = vmatmul.mubr.f32.gmra.mrb[0].mxu0 %v386
      %v589 = vpop.f32.mrb[0].mxu0
      %v590 = vadd.f32 0.0, %v589
      %v591 = vpop.f32.mrb[0].mxu0
      %592 = vmatprep.mubr.f32.mxu0 0.0
      %593 = vmatmul.mubr.f32.gmra.mrb[0].mxu0 %v389
      %v594 = vpop.f32.mrb[0].mxu0
      %v595 = vadd.f32 0.0, %v594
      %v596 = vpop.f32.mrb[0].mxu0
      %597 = vmatprep.mubr.f32.mxu0 0.0
      %598 = vmatmul.mubr.f32.gmra.mrb[0].mxu0 %v392
      %v599 = vpop.f32.mrb[0].mxu0
      %v600 = vadd.f32 0.0, %v599
      %v601 = vpop.f32.mrb[0].mxu0
      %602 = vmatprep.mubr.f32.mxu0 0.0
      %603 = vmatmul.mubr.f32.gmra.mrb[0].mxu0 %v395
      %v604 = vpop.f32.mrb[0].mxu0
      %v605 = vadd.f32 0.0, %v604
      %v606 = vpop.f32.mrb[0].mxu0
      %607 = vmatprep.mubr.f32.mxu0 0.0
      %608 = vmatmul.mubr.f32.gmra.mrb[0].mxu0 %v398
      %v609 = vpop.f32.mrb[0].mxu0
      %v610 = vadd.f32 0.0, %v609
      %v611 = vpop.f32.mrb[0].mxu0
      %612 = vmatprep.mubr.f32.mxu0 0.0
      %613 = vmatmul.mubr.f32.gmra.mrb[0].mxu0 %v401
      %v614 = vpop.f32.mrb[0].mxu0
      %v615 = vadd.f32 0.0, %v614
      %v616 = vpop.f32.mrb[0].mxu0
      %617 = vmatprep.mubr.f32.mxu0 0.0
      %618 = vmatmul.mubr.f32.gmra.mrb[0].mxu0 %v404
      %v619 = vpop.f32.mrb[0].mxu0
      %v620 = vadd.f32 0.0, %v619
      %v621 = vpop.f32.mrb[0].mxu0
      %622 = vmatprep.mubr.f32.mxu0 0.0
      %623 = vmatmul.mubr.f32.gmra.mrb[0].mxu0 %v407
      %v624 = vpop.f32.mrb[0].mxu0
      %v625 = vadd.f32 0.0, %v624
      %v626 = vpop.f32.mrb[0].mxu0
      %627 = vmatprep.mubr.f32.mxu0 0.0
      %628 = vmatmul.mubr.f32.gmra.mrb[0].mxu0 %v410
      %v629 = vpop.f32.mrb[0].mxu0
      %v630 = vadd.f32 0.0, %v629
      %v631 = vpop.f32.mrb[0].mxu0
      %632 = vmatprep.mubr.f32.mxu0 0.0
      %633 = vmatmul.mubr.f32.gmra.mrb[0].mxu0 %v413
      %v634 = vpop.f32.mrb[0].mxu0
      %v635 = vadd.f32 0.0, %v634
      %v636 = vpop.f32.mrb[0].mxu0
      %637 = vmatprep.mubr.f32.mxu0 0.0
      %638 = vmatmul.mubr.f32.gmra.mrb[0].mxu0 %v416
      %v639 = vpop.f32.mrb[0].mxu0
      %v640 = vadd.f32 0.0, %v639
      %v641 = vpop.f32.mrb[0].mxu0
      %642 = vdwg.mxu0
      %v643 = vsel %vm321, %v485, -inf
      %644 = vmax.xlane.f32.xlu0 %v643
      %v645 = vpop.xlane.xlu0 %644
      %v646 = vsel %vm321, %v490, -inf
      %647 = vmax.xlane.f32.xlu0 %v646
      %v648 = vpop.xlane.xlu0 %647
      %v649 = vsel %vm321, %v495, -inf
      %650 = vmax.xlane.f32.xlu0 %v649
      %v651 = vpop.xlane.xlu0 %650
      %v652 = vsel %vm321, %v500, -inf
      %653 = vmax.xlane.f32.xlu0 %v652
      %v654 = vpop.xlane.xlu0 %653
      %v655 = vsel %vm321, %v505, -inf
      %656 = vmax.xlane.f32.xlu0 %v655
      %v657 = vpop.xlane.xlu0 %656
      %v658 = vsel %vm321, %v510, -inf
      %659 = vmax.xlane.f32.xlu0 %v658
      %v660 = vpop.xlane.xlu0 %659
      %v661 = vsel %vm321, %v515, -inf
      %662 = vmax.xlane.f32.xlu0 %v661
      %v663 = vpop.xlane.xlu0 %662
      %v664 = vsel %vm321, %v520, -inf
      %665 = vmax.xlane.f32.xlu0 %v664
      %v666 = vpop.xlane.xlu0 %665
      %v667 = vsel %vm321, %v525, -inf
      %668 = vmax.xlane.f32.xlu0 %v667
      %v669 = vpop.xlane.xlu0 %668
      %v670 = vsel %vm321, %v530, -inf
      %671 = vmax.xlane.f32.xlu0 %v670
      %v672 = vpop.xlane.xlu0 %671
      %v673 = vsel %vm321, %v535, -inf
      %674 = vmax.xlane.f32.xlu0 %v673
      %v675 = vpop.xlane.xlu0 %674
      %v676 = vsel %vm321, %v540, -inf
      %677 = vmax.xlane.f32.xlu0 %v676
      %v678 = vpop.xlane.xlu0 %677
      %v679 = vsel %vm321, %v545, -inf
      %680 = vmax.xlane.f32.xlu0 %v679
      %v681 = vpop.xlane.xlu0 %680
      %v682 = vsel %vm321, %v550, -inf
      %683 = vmax.xlane.f32.xlu0 %v682
      %v684 = vpop.xlane.xlu0 %683
      %v685 = vsel %vm321, %v555, -inf
      %686 = vmax.xlane.f32.xlu0 %v685
      %v687 = vpop.xlane.xlu0 %686
      %v688 = vsel %vm321, %v560, -inf
      %689 = vmax.xlane.f32.xlu0 %v688
      %v690 = vpop.xlane.xlu0 %689
      %v691 = vsel %vm321, %v565, -inf
      %692 = vmax.xlane.f32.xlu0 %v691
      %v693 = vpop.xlane.xlu0 %692
      %v694 = vsel %vm321, %v570, -inf
      %695 = vmax.xlane.f32.xlu0 %v694
      %v696 = vpop.xlane.xlu0 %695
      %v697 = vsel %vm321, %v575, -inf
      %698 = vmax.xlane.f32.xlu0 %v697
      %v699 = vpop.xlane.xlu0 %698
      %v700 = vsel %vm321, %v580, -inf
      %701 = vmax.xlane.f32.xlu0 %v700
      %v702 = vpop.xlane.xlu0 %701
      %v703 = vsel %vm321, %v585, -inf
      %704 = vmax.xlane.f32.xlu0 %v703
      %v705 = vpop.xlane.xlu0 %704
      %v706 = vsel %vm321, %v590, -inf
      %707 = vmax.xlane.f32.xlu0 %v706
      %v708 = vpop.xlane.xlu0 %707
      %v709 = vsel %vm321, %v595, -inf
      %710 = vmax.xlane.f32.xlu0 %v709
      %v711 = vpop.xlane.xlu0 %710
      %v712 = vsel %vm321, %v600, -inf
      %713 = vmax.xlane.f32.xlu0 %v712
      %v714 = vpop.xlane.xlu0 %713
      %v715 = vsel %vm321, %v605, -inf
      %716 = vmax.xlane.f32.xlu0 %v715
      %v717 = vpop.xlane.xlu0 %716
      %v718 = vsel %vm321, %v610, -inf
      %719 = vmax.xlane.f32.xlu0 %v718
      %v720 = vpop.xlane.xlu0 %719
      %v721 = vsel %vm321, %v615, -inf
      %722 = vmax.xlane.f32.xlu0 %v721
      %v723 = vpop.xlane.xlu0 %722
      %v724 = vsel %vm321, %v620, -inf
      %725 = vmax.xlane.f32.xlu0 %v724
      %v726 = vpop.xlane.xlu0 %725
      %v727 = vsel %vm321, %v625, -inf
      %728 = vmax.xlane.f32.xlu0 %v727
      %v729 = vpop.xlane.xlu0 %728
      %v730 = vsel %vm321, %v630, -inf
      %731 = vmax.xlane.f32.xlu0 %v730
      %v732 = vpop.xlane.xlu0 %731
      %v733 = vsel %vm321, %v635, -inf
      %734 = vmax.xlane.f32.xlu0 %v733
      %v735 = vpop.xlane.xlu0 %734
      %v736 = vsel %vm321, %v640, -inf
      %737 = vmax.xlane.f32.xlu0 %v736
      %v738 = vpop.xlane.xlu0 %737
      %v739 = vsub.f32 %v485, %v645
      %v740 = vsub.f32 %v490, %v648
      %v741 = vsub.f32 %v495, %v651
      %v742 = vsub.f32 %v500, %v654
      %v743 = vsub.f32 %v505, %v657
      %v744 = vsub.f32 %v510, %v660
      %v745 = vsub.f32 %v515, %v663
      %v746 = vsub.f32 %v520, %v666
      %v747 = vsub.f32 %v525, %v669
      %v748 = vsub.f32 %v530, %v672
      %v749 = vsub.f32 %v535, %v675
      %v750 = vsub.f32 %v540, %v678
      %v751 = vsub.f32 %v545, %v681
      %v752 = vsub.f32 %v550, %v684
      %v753 = vsub.f32 %v555, %v687
      %v754 = vsub.f32 %v560, %v690
      %v755 = vsub.f32 %v565, %v693
      %v756 = vsub.f32 %v570, %v696
      %v757 = vsub.f32 %v575, %v699
      %v758 = vsub.f32 %v580, %v702
      %v759 = vsub.f32 %v585, %v705
      %v760 = vsub.f32 %v590, %v708
      %v761 = vsub.f32 %v595, %v711
      %v762 = vsub.f32 %v600, %v714
      %v763 = vsub.f32 %v605, %v717
      %v764 = vsub.f32 %v610, %v720
      %v765 = vsub.f32 %v615, %v723
      %v766 = vsub.f32 %v620, %v726
      %v767 = vsub.f32 %v625, %v729
      %v768 = vsub.f32 %v630, %v732
      %v769 = vsub.f32 %v635, %v735
      %v770 = vsub.f32 %v640, %v738
      %v771 = vmul.f32 %v739, 1.442695
      %v772 = vpow.pop %v771
      %v773 = vmul.f32 %v740, 1.442695
      %v774 = vpow.pop %v773
      %v775 = vmul.f32 %v741, 1.442695
      %v776 = vpow.pop %v775
      %v777 = vmul.f32 %v742, 1.442695
      %v778 = vpow.pop %v777
      %v779 = vmul.f32 %v743, 1.442695
      %v780 = vpow.pop %v779
      %v781 = vmul.f32 %v744, 1.442695
      %v782 = vpow.pop %v781
      %v783 = vmul.f32 %v745, 1.442695
      %v784 = vpow.pop %v783
      %v785 = vmul.f32 %v746, 1.442695
      %v786 = vpow.pop %v785
      %v787 = vmul.f32 %v747, 1.442695
      %v788 = vpow.pop %v787
      %v789 = vmul.f32 %v748, 1.442695
      %v790 = vpow.pop %v789
      %v791 = vmul.f32 %v749, 1.442695
      %v792 = vpow.pop %v791
      %v793 = vmul.f32 %v750, 1.442695
      %v794 = vpow.pop %v793
      %v795 = vmul.f32 %v751, 1.442695
      %v796 = vpow.pop %v795
      %v797 = vmul.f32 %v752, 1.442695
      %v798 = vpow.pop %v797
      %v799 = vmul.f32 %v753, 1.442695
      %v800 = vpow.pop %v799
      %v801 = vmul.f32 %v754, 1.442695
      %v802 = vpow.pop %v801
      %v803 = vmul.f32 %v755, 1.442695
      %v804 = vpow.pop %v803
      %v805 = vmul.f32 %v756, 1.442695
      %v806 = vpow.pop %v805
      %v807 = vmul.f32 %v757, 1.442695
      %v808 = vpow.pop %v807
      %v809 = vmul.f32 %v758, 1.442695
      %v810 = vpow.pop %v809
      %v811 = vmul.f32 %v759, 1.442695
      %v812 = vpow.pop %v811
      %v813 = vmul.f32 %v760, 1.442695
      %v814 = vpow.pop %v813
      %v815 = vmul.f32 %v761, 1.442695
      %v816 = vpow.pop %v815
      %v817 = vmul.f32 %v762, 1.442695
      %v818 = vpow.pop %v817
      %v819 = vmul.f32 %v763, 1.442695
      %v820 = vpow.pop %v819
      %v821 = vmul.f32 %v764, 1.442695
      %v822 = vpow.pop %v821
      %v823 = vmul.f32 %v765, 1.442695
      %v824 = vpow.pop %v823
      %v825 = vmul.f32 %v766, 1.442695
      %v826 = vpow.pop %v825
      %v827 = vmul.f32 %v767, 1.442695
      %v828 = vpow.pop %v827
      %v829 = vmul.f32 %v768, 1.442695
      %v830 = vpow.pop %v829
      %v831 = vmul.f32 %v769, 1.442695
      %v832 = vpow.pop %v831
      %v833 = vmul.f32 %v770, 1.442695
      %v834 = vpow.pop %v833
      %v835 = vsel %vm321, %v772, 0.0
      %836 = vadd.xlane.f32.xlu0 %v835
      %v837 = vpop.xlane.xlu0 %836
      %v838 = vsel %vm321, %v774, 0.0
      %839 = vadd.xlane.f32.xlu0 %v838
      %v840 = vpop.xlane.xlu0 %839
      %v841 = vsel %vm321, %v776, 0.0
      %842 = vadd.xlane.f32.xlu0 %v841
      %v843 = vpop.xlane.xlu0 %842
      %v844 = vsel %vm321, %v778, 0.0
      %845 = vadd.xlane.f32.xlu0 %v844
      %v846 = vpop.xlane.xlu0 %845
      %v847 = vsel %vm321, %v780, 0.0
      %848 = vadd.xlane.f32.xlu0 %v847
      %v849 = vpop.xlane.xlu0 %848
      %v850 = vsel %vm321, %v782, 0.0
      %851 = vadd.xlane.f32.xlu0 %v850
      %v852 = vpop.xlane.xlu0 %851
      %v853 = vsel %vm321, %v784, 0.0
      %854 = vadd.xlane.f32.xlu0 %v853
      %v855 = vpop.xlane.xlu0 %854
      %v856 = vsel %vm321, %v786, 0.0
      %857 = vadd.xlane.f32.xlu0 %v856
      %v858 = vpop.xlane.xlu0 %857
      %v859 = vsel %vm321, %v788, 0.0
      %860 = vadd.xlane.f32.xlu0 %v859
      %v861 = vpop.xlane.xlu0 %860
      %v862 = vsel %vm321, %v790, 0.0
      %863 = vadd.xlane.f32.xlu0 %v862
      %v864 = vpop.xlane.xlu0 %863
      %v865 = vsel %vm321, %v792, 0.0
      %866 = vadd.xlane.f32.xlu0 %v865
      %v867 = vpop.xlane.xlu0 %866
      %v868 = vsel %vm321, %v794, 0.0
      %869 = vadd.xlane.f32.xlu0 %v868
      %v870 = vpop.xlane.xlu0 %869
      %v871 = vsel %vm321, %v796, 0.0
      %872 = vadd.xlane.f32.xlu0 %v871
      %v873 = vpop.xlane.xlu0 %872
      %v874 = vsel %vm321, %v798, 0.0
      %875 = vadd.xlane.f32.xlu0 %v874
      %v876 = vpop.xlane.xlu0 %875
      %v877 = vsel %vm321, %v800, 0.0
      %878 = vadd.xlane.f32.xlu0 %v877
      %v879 = vpop.xlane.xlu0 %878
      %v880 = vsel %vm321, %v802, 0.0
      %881 = vadd.xlane.f32.xlu0 %v880
      %v882 = vpop.xlane.xlu0 %881
      %v883 = vsel %vm321, %v804, 0.0
      %884 = vadd.xlane.f32.xlu0 %v883
      %v885 = vpop.xlane.xlu0 %884
      %v886 = vsel %vm321, %v806, 0.0
      %887 = vadd.xlane.f32.xlu0 %v886
      %v888 = vpop.xlane.xlu0 %887
      %v889 = vsel %vm321, %v808, 0.0
      %890 = vadd.xlane.f32.xlu0 %v889
      %v891 = vpop.xlane.xlu0 %890
      %v892 = vsel %vm321, %v810, 0.0
      %893 = vadd.xlane.f32.xlu0 %v892
      %v894 = vpop.xlane.xlu0 %893
      %v895 = vsel %vm321, %v812, 0.0
      %896 = vadd.xlane.f32.xlu0 %v895
      %v897 = vpop.xlane.xlu0 %896
      %v898 = vsel %vm321, %v814, 0.0
      %899 = vadd.xlane.f32.xlu0 %v898
      %v900 = vpop.xlane.xlu0 %899
      %v901 = vsel %vm321, %v816, 0.0
      %902 = vadd.xlane.f32.xlu0 %v901
      %v903 = vpop.xlane.xlu0 %902
      %v904 = vsel %vm321, %v818, 0.0
      %905 = vadd.xlane.f32.xlu0 %v904
      %v906 = vpop.xlane.xlu0 %905
      %v907 = vsel %vm321, %v820, 0.0
      %908 = vadd.xlane.f32.xlu0 %v907
      %v909 = vpop.xlane.xlu0 %908
      %v910 = vsel %vm321, %v822, 0.0
      %911 = vadd.xlane.f32.xlu0 %v910
      %v912 = vpop.xlane.xlu0 %911
      %v913 = vsel %vm321, %v824, 0.0
      %914 = vadd.xlane.f32.xlu0 %v913
      %v915 = vpop.xlane.xlu0 %914
      %v916 = vsel %vm321, %v826, 0.0
      %917 = vadd.xlane.f32.xlu0 %v916
      %v918 = vpop.xlane.xlu0 %917
      %v919 = vsel %vm321, %v828, 0.0
      %920 = vadd.xlane.f32.xlu0 %v919
      %v921 = vpop.xlane.xlu0 %920
      %v922 = vsel %vm321, %v830, 0.0
      %923 = vadd.xlane.f32.xlu0 %v922
      %v924 = vpop.xlane.xlu0 %923
      %v925 = vsel %vm321, %v832, 0.0
      %926 = vadd.xlane.f32.xlu0 %v925
      %v927 = vpop.xlane.xlu0 %926
      %v928 = vsel %vm321, %v834, 0.0
      %929 = vadd.xlane.f32.xlu0 %v928
      %v930 = vpop.xlane.xlu0 %929
      %v931 = vrcp.pop %v837
      %v932 = vrcp.pop %v840
      %v933 = vrcp.pop %v843
      %v934 = vrcp.pop %v846
      %v935 = vrcp.pop %v849
      %v936 = vrcp.pop %v852
      %v937 = vrcp.pop %v855
      %v938 = vrcp.pop %v858
      %v939 = vrcp.pop %v861
      %v940 = vrcp.pop %v864
      %v941 = vrcp.pop %v867
      %v942 = vrcp.pop %v870
      %v943 = vrcp.pop %v873
      %v944 = vrcp.pop %v876
      %v945 = vrcp.pop %v879
      %v946 = vrcp.pop %v882
      %v947 = vrcp.pop %v885
      %v948 = vrcp.pop %v888
      %v949 = vrcp.pop %v891
      %v950 = vrcp.pop %v894
      %v951 = vrcp.pop %v897
      %v952 = vrcp.pop %v900
      %v953 = vrcp.pop %v903
      %v954 = vrcp.pop %v906
      %v955 = vrcp.pop %v909
      %v956 = vrcp.pop %v912
      %v957 = vrcp.pop %v915
      %v958 = vrcp.pop %v918
      %v959 = vrcp.pop %v921
      %v960 = vrcp.pop %v924
      %v961 = vrcp.pop %v927
      %v962 = vrcp.pop %v930
      %v963 = vmul.f32 %v772, %v931
      %v964 = vmul.f32 %v774, %v932
      %v965 = vmul.f32 %v776, %v933
      %v966 = vmul.f32 %v778, %v934
      %v967 = vmul.f32 %v780, %v935
      %v968 = vmul.f32 %v782, %v936
      %v969 = vmul.f32 %v784, %v937
      %v970 = vmul.f32 %v786, %v938
      %v971 = vmul.f32 %v788, %v939
      %v972 = vmul.f32 %v790, %v940
      %v973 = vmul.f32 %v792, %v941
      %v974 = vmul.f32 %v794, %v942
      %v975 = vmul.f32 %v796, %v943
      %v976 = vmul.f32 %v798, %v944
      %v977 = vmul.f32 %v800, %v945
      %v978 = vmul.f32 %v802, %v946
      %v979 = vmul.f32 %v804, %v947
      %v980 = vmul.f32 %v806, %v948
      %v981 = vmul.f32 %v808, %v949
      %v982 = vmul.f32 %v810, %v950
      %v983 = vmul.f32 %v812, %v951
      %v984 = vmul.f32 %v814, %v952
      %v985 = vmul.f32 %v816, %v953
      %v986 = vmul.f32 %v818, %v954
      %v987 = vmul.f32 %v820, %v955
      %v988 = vmul.f32 %v822, %v956
      %v989 = vmul.f32 %v824, %v957
      %v990 = vmul.f32 %v826, %v958
      %v991 = vmul.f32 %v828, %v959
      %v992 = vmul.f32 %v830, %v960
      %v993 = vmul.f32 %v832, %v961
      %v994 = vmul.f32 %v834, %v962
      %v995 = vmul.f32 %v287, %v963
      %v996 = vmul.f32 %v288, %v964
      %v997 = vmul.f32 %v289, %v965
      %v998 = vmul.f32 %v290, %v966
      %v999 = vmul.f32 %v291, %v967
      %v1000 = vmul.f32 %v292, %v968
      %v1001 = vmul.f32 %v293, %v969
      %v1002 = vmul.f32 %v294, %v970
      %v1003 = vmul.f32 %v295, %v971
      %v1004 = vmul.f32 %v296, %v972
      %v1005 = vmul.f32 %v297, %v973
      %v1006 = vmul.f32 %v298, %v974
      %v1007 = vmul.f32 %v299, %v975
      %v1008 = vmul.f32 %v300, %v976
      %v1009 = vmul.f32 %v301, %v977
      %v1010 = vmul.f32 %v302, %v978
      %v1011 = vmul.f32 %v303, %v979
      %v1012 = vmul.f32 %v304, %v980
      %v1013 = vmul.f32 %v305, %v981
      %v1014 = vmul.f32 %v306, %v982
      %v1015 = vmul.f32 %v307, %v983
      %v1016 = vmul.f32 %v308, %v984
      %v1017 = vmul.f32 %v309, %v985
      %v1018 = vmul.f32 %v310, %v986
      %v1019 = vmul.f32 %v311, %v987
      %v1020 = vmul.f32 %v312, %v988
      %v1021 = vmul.f32 %v313, %v989
      %v1022 = vmul.f32 %v314, %v990
      %v1023 = vmul.f32 %v315, %v991
      %v1024 = vmul.f32 %v316, %v992
      %v1025 = vmul.f32 %v317, %v993
      %v1026 = vmul.f32 %v318, %v994
      %v1027 = vld [vmem:[%s2] sm:$0xff]
      %v1028 = vld [vmem:[%s2 + $0x8] sm:$0xff]
      %v1029 = vld [vmem:[%s3] sm:$0x1]
      %v1031 = vlaneseq
      %v1032 = vshrl.u32 %v1031, 7
      %v1033 = vsub.s32 0, %v1032
      %v1034 = vrot.slane %v1029, %v1033
      %v1037 = vsel %vm321, %v995, 0
      %v1040 = vsel %vm321, %v996, 0
      %v1043 = vsel %vm321, %v997, 0
      %v1046 = vsel %vm321, %v998, 0
      %v1049 = vsel %vm321, %v999, 0
      %v1052 = vsel %vm321, %v1000, 0
      %v1055 = vsel %vm321, %v1001, 0
      %v1058 = vsel %vm321, %v1002, 0
      %v1061 = vsel %vm321, %v1003, 0
      %v1064 = vsel %vm321, %v1004, 0
      %v1067 = vsel %vm321, %v1005, 0
      %v1070 = vsel %vm321, %v1006, 0
      %v1073 = vsel %vm321, %v1007, 0
      %v1076 = vsel %vm321, %v1008, 0
      %v1079 = vsel %vm321, %v1009, 0
      %v1082 = vsel %vm321, %v1010, 0
      %v1085 = vsel %vm321, %v1011, 0
      %v1088 = vsel %vm321, %v1012, 0
      %v1091 = vsel %vm321, %v1013, 0
      %v1094 = vsel %vm321, %v1014, 0
      %v1097 = vsel %vm321, %v1015, 0
      %v1100 = vsel %vm321, %v1016, 0
      %v1103 = vsel %vm321, %v1017, 0
      %v1106 = vsel %vm321, %v1018, 0
      %v1109 = vsel %vm321, %v1019, 0
      %v1112 = vsel %vm321, %v1020, 0
      %v1115 = vsel %vm321, %v1021, 0
      %v1118 = vsel %vm321, %v1022, 0
      %v1121 = vsel %vm321, %v1023, 0
      %v1124 = vsel %vm321, %v1024, 0
      %v1127 = vsel %vm321, %v1025, 0
      %v1130 = vsel %vm321, %v1026, 0
      %1132 = vmatprep.subr.mxu0 0.0
      %1133 = vmatpush1.msra.mxu0 %v1027
      %1134 = vmatprep.subr.mxu0 0.0
      %1135 = vmatpush1.msra.mxu0 %v1028
      %1136 = vmatprep.subr.mxu0 0.0
      %1137 = vmatpush1.msra.mxu0 0.0
      %1138 = vmatprep.subr.mxu0 0.0
      %1139 = vmatpush1.msra.mxu0 0.0
      %1140 = vmatprep.subr.mxu0 0.0
      %1141 = vmatpush1.msra.mxu0 0.0
      %1142 = vmatprep.subr.mxu0 0.0
      %1143 = vmatpush1.msra.mxu0 0.0
      %1144 = vmatprep.subr.mxu0 0.0
      %1145 = vmatpush1.msra.mxu0 0.0
      %1146 = vmatprep.subr.mxu0 0.0
      %1147 = vmatpush1.msra.mxu0 0.0
      %1148 = vmatprep.subr.mxu0 0.0
      %1149 = vmatpush1.msra.mxu0 0.0
      %1150 = vmatprep.subr.mxu0 0.0
      %1151 = vmatpush1.msra.mxu0 0.0
      %1152 = vmatprep.subr.mxu0 0.0
      %1153 = vmatpush1.msra.mxu0 0.0
      %1154 = vmatprep.subr.mxu0 0.0
      %1155 = vmatpush1.msra.mxu0 0.0
      %1156 = vmatprep.subr.mxu0 0.0
      %1157 = vmatpush1.msra.mxu0 0.0
      %1158 = vmatprep.subr.mxu0 0.0
      %1159 = vmatpush1.msra.mxu0 0.0
      %1160 = vmatprep.subr.mxu0 0.0
      %1161 = vmatpush1.msra.mxu0 0.0
      %1162 = vmatprep.subr.mxu0 0.0
      %1163 = vmatpush1.msra.mxu0 0.0
      %1164 = vmatprep.subr.mxu0 0.0
      %1165 = vmatpush1.msra.mxu0 0.0
      %1166 = vmatprep.subr.mxu0 0.0
      %1167 = vmatpush1.msra.mxu0 0.0
      %1168 = vmatprep.subr.mxu0 0.0
      %1169 = vmatpush1.msra.mxu0 0.0
      %1170 = vmatprep.subr.mxu0 0.0
      %1171 = vmatpush1.msra.mxu0 0.0
      %1172 = vmatprep.subr.mxu0 0.0
      %1173 = vmatpush1.msra.mxu0 0.0
      %1174 = vmatprep.subr.mxu0 0.0
      %1175 = vmatpush1.msra.mxu0 0.0
      %1176 = vmatprep.subr.mxu0 0.0
      %1177 = vmatpush1.msra.mxu0 0.0
      %1178 = vmatprep.subr.mxu0 0.0
      %1179 = vmatpush1.msra.mxu0 0.0
      %1180 = vmatprep.subr.mxu0 0.0
      %1181 = vmatpush1.msra.mxu0 0.0
      %1182 = vmatprep.subr.mxu0 0.0
      %1183 = vmatpush1.msra.mxu0 0.0
      %1184 = vmatprep.subr.mxu0 0.0
      %1185 = vmatpush1.msra.mxu0 0.0
      %1186 = vmatprep.subr.mxu0 0.0
      %1187 = vmatpush1.msra.mxu0 0.0
      %1188 = vmatprep.subr.mxu0 0.0
      %1189 = vmatpush1.msra.mxu0 0.0
      %1190 = vmatprep.subr.mxu0 0.0
      %1191 = vmatpush1.msra.mxu0 0.0
      %1192 = vmatprep.subr.mxu0 0.0
      %1193 = vmatpush1.msra.mxu0 0.0
      %1194 = vmatprep.subr.mxu0 0.0
      %1195 = vmatpush1.msra.mxu0 0.0
      %1196 = vmatprep.mubr.f32.mxu0 0.0
      %1197 = vmatmul.mubr.f32.gmra.mrb[0].mxu0 %v1037
      %v1198 = vpop.f32.mrb[0].mxu0
      %v1199 = vadd.f32 %v1034, %v1198
      %v1200 = vpop.f32.mrb[0].mxu0
      %1201 = vmatprep.mubr.f32.mxu0 0.0
      %1202 = vmatmul.mubr.f32.gmra.mrb[0].mxu0 %v1040
      %v1203 = vpop.f32.mrb[0].mxu0
      %v1204 = vadd.f32 %v1034, %v1203
      %v1205 = vpop.f32.mrb[0].mxu0
      %1206 = vmatprep.mubr.f32.mxu0 0.0
      %1207 = vmatmul.mubr.f32.gmra.mrb[0].mxu0 %v1043
      %v1208 = vpop.f32.mrb[0].mxu0
      %v1209 = vadd.f32 %v1034, %v1208
      %v1210 = vpop.f32.mrb[0].mxu0
      %1211 = vmatprep.mubr.f32.mxu0 0.0
      %1212 = vmatmul.mubr.f32.gmra.mrb[0].mxu0 %v1046
      %v1213 = vpop.f32.mrb[0].mxu0
      %v1214 = vadd.f32 %v1034, %v1213
      %v1215 = vpop.f32.mrb[0].mxu0
      %1216 = vmatprep.mubr.f32.mxu0 0.0
      %1217 = vmatmul.mubr.f32.gmra.mrb[0].mxu0 %v1049
      %v1218 = vpop.f32.mrb[0].mxu0
      %v1219 = vadd.f32 %v1034, %v1218
      %v1220 = vpop.f32.mrb[0].mxu0
      %1221 = vmatprep.mubr.f32.mxu0 0.0
      %1222 = vmatmul.mubr.f32.gmra.mrb[0].mxu0 %v1052
      %v1223 = vpop.f32.mrb[0].mxu0
      %v1224 = vadd.f32 %v1034, %v1223
      %v1225 = vpop.f32.mrb[0].mxu0
      %1226 = vmatprep.mubr.f32.mxu0 0.0
      %1227 = vmatmul.mubr.f32.gmra.mrb[0].mxu0 %v1055
      %v1228 = vpop.f32.mrb[0].mxu0
      %v1229 = vadd.f32 %v1034, %v1228
      %v1230 = vpop.f32.mrb[0].mxu0
      %1231 = vmatprep.mubr.f32.mxu0 0.0
      %1232 = vmatmul.mubr.f32.gmra.mrb[0].mxu0 %v1058
      %v1233 = vpop.f32.mrb[0].mxu0
      %v1234 = vadd.f32 %v1034, %v1233
      %v1235 = vpop.f32.mrb[0].mxu0
      %1236 = vmatprep.mubr.f32.mxu0 0.0
      %1237 = vmatmul.mubr.f32.gmra.mrb[0].mxu0 %v1061
      %v1238 = vpop.f32.mrb[0].mxu0
      %v1239 = vadd.f32 %v1034, %v1238
      %v1240 = vpop.f32.mrb[0].mxu0
      %1241 = vmatprep.mubr.f32.mxu0 0.0
      %1242 = vmatmul.mubr.f32.gmra.mrb[0].mxu0 %v1064
      %v1243 = vpop.f32.mrb[0].mxu0
      %v1244 = vadd.f32 %v1034, %v1243
      %v1245 = vpop.f32.mrb[0].mxu0
      %1246 = vmatprep.mubr.f32.mxu0 0.0
      %1247 = vmatmul.mubr.f32.gmra.mrb[0].mxu0 %v1067
      %v1248 = vpop.f32.mrb[0].mxu0
      %v1249 = vadd.f32 %v1034, %v1248
      %v1250 = vpop.f32.mrb[0].mxu0
      %1251 = vmatprep.mubr.f32.mxu0 0.0
      %1252 = vmatmul.mubr.f32.gmra.mrb[0].mxu0 %v1070
      %v1253 = vpop.f32.mrb[0].mxu0
      %v1254 = vadd.f32 %v1034, %v1253
      %v1255 = vpop.f32.mrb[0].mxu0
      %1256 = vmatprep.mubr.f32.mxu0 0.0
      %1257 = vmatmul.mubr.f32.gmra.mrb[0].mxu0 %v1073
      %v1258 = vpop.f32.mrb[0].mxu0
      %v1259 = vadd.f32 %v1034, %v1258
      %v1260 = vpop.f32.mrb[0].mxu0
      %1261 = vmatprep.mubr.f32.mxu0 0.0
      %1262 = vmatmul.mubr.f32.gmra.mrb[0].mxu0 %v1076
      %v1263 = vpop.f32.mrb[0].mxu0
      %v1264 = vadd.f32 %v1034, %v1263
      %v1265 = vpop.f32.mrb[0].mxu0
      %1266 = vmatprep.mubr.f32.mxu0 0.0
      %1267 = vmatmul.mubr.f32.gmra.mrb[0].mxu0 %v1079
      %v1268 = vpop.f32.mrb[0].mxu0
      %v1269 = vadd.f32 %v1034, %v1268
      %v1270 = vpop.f32.mrb[0].mxu0
      %1271 = vmatprep.mubr.f32.mxu0 0.0
      %1272 = vmatmul.mubr.f32.gmra.mrb[0].mxu0 %v1082
      %v1273 = vpop.f32.mrb[0].mxu0
      %v1274 = vadd.f32 %v1034, %v1273
      %v1275 = vpop.f32.mrb[0].mxu0
      %1276 = vmatprep.mubr.f32.mxu0 0.0
      %1277 = vmatmul.mubr.f32.gmra.mrb[0].mxu0 %v1085
      %v1278 = vpop.f32.mrb[0].mxu0
      %v1279 = vadd.f32 %v1034, %v1278
      %v1280 = vpop.f32.mrb[0].mxu0
      %1281 = vmatprep.mubr.f32.mxu0 0.0
      %1282 = vmatmul.mubr.f32.gmra.mrb[0].mxu0 %v1088
      %v1283 = vpop.f32.mrb[0].mxu0
      %v1284 = vadd.f32 %v1034, %v1283
      %v1285 = vpop.f32.mrb[0].mxu0
      %1286 = vmatprep.mubr.f32.mxu0 0.0
      %1287 = vmatmul.mubr.f32.gmra.mrb[0].mxu0 %v1091
      %v1288 = vpop.f32.mrb[0].mxu0
      %v1289 = vadd.f32 %v1034, %v1288
      %v1290 = vpop.f32.mrb[0].mxu0
      %1291 = vmatprep.mubr.f32.mxu0 0.0
      %1292 = vmatmul.mubr.f32.gmra.mrb[0].mxu0 %v1094
      %v1293 = vpop.f32.mrb[0].mxu0
      %v1294 = vadd.f32 %v1034, %v1293
      %v1295 = vpop.f32.mrb[0].mxu0
      %1296 = vmatprep.mubr.f32.mxu0 0.0
      %1297 = vmatmul.mubr.f32.gmra.mrb[0].mxu0 %v1097
      %v1298 = vpop.f32.mrb[0].mxu0
      %v1299 = vadd.f32 %v1034, %v1298
      %v1300 = vpop.f32.mrb[0].mxu0
      %1301 = vmatprep.mubr.f32.mxu0 0.0
      %1302 = vmatmul.mubr.f32.gmra.mrb[0].mxu0 %v1100
      %v1303 = vpop.f32.mrb[0].mxu0
      %v1304 = vadd.f32 %v1034, %v1303
      %v1305 = vpop.f32.mrb[0].mxu0
      %1306 = vmatprep.mubr.f32.mxu0 0.0
      %1307 = vmatmul.mubr.f32.gmra.mrb[0].mxu0 %v1103
      %v1308 = vpop.f32.mrb[0].mxu0
      %v1309 = vadd.f32 %v1034, %v1308
      %v1310 = vpop.f32.mrb[0].mxu0
      %1311 = vmatprep.mubr.f32.mxu0 0.0
      %1312 = vmatmul.mubr.f32.gmra.mrb[0].mxu0 %v1106
      %v1313 = vpop.f32.mrb[0].mxu0
      %v1314 = vadd.f32 %v1034, %v1313
      %v1315 = vpop.f32.mrb[0].mxu0
      %1316 = vmatprep.mubr.f32.mxu0 0.0
      %1317 = vmatmul.mubr.f32.gmra.mrb[0].mxu0 %v1109
      %v1318 = vpop.f32.mrb[0].mxu0
      %v1319 = vadd.f32 %v1034, %v1318
      %v1320 = vpop.f32.mrb[0].mxu0
      %1321 = vmatprep.mubr.f32.mxu0 0.0
      %1322 = vmatmul.mubr.f32.gmra.mrb[0].mxu0 %v1112
      %v1323 = vpop.f32.mrb[0].mxu0
      %v1324 = vadd.f32 %v1034, %v1323
      %v1325 = vpop.f32.mrb[0].mxu0
      %1326 = vmatprep.mubr.f32.mxu0 0.0
      %1327 = vmatmul.mubr.f32.gmra.mrb[0].mxu0 %v1115
      %v1328 = vpop.f32.mrb[0].mxu0
      %v1329 = vadd.f32 %v1034, %v1328
      %v1330 = vpop.f32.mrb[0].mxu0
      %1331 = vmatprep.mubr.f32.mxu0 0.0
      %1332 = vmatmul.mubr.f32.gmra.mrb[0].mxu0 %v1118
      %v1333 = vpop.f32.mrb[0].mxu0
      %v1334 = vadd.f32 %v1034, %v1333
      %v1335 = vpop.f32.mrb[0].mxu0
      %1336 = vmatprep.mubr.f32.mxu0 0.0
      %1337 = vmatmul.mubr.f32.gmra.mrb[0].mxu0 %v1121
      %v1338 = vpop.f32.mrb[0].mxu0
      %v1339 = vadd.f32 %v1034, %v1338
      %v1340 = vpop.f32.mrb[0].mxu0
      %1341 = vmatprep.mubr.f32.mxu0 0.0
      %1342 = vmatmul.mubr.f32.gmra.mrb[0].mxu0 %v1124
      %v1343 = vpop.f32.mrb[0].mxu0
      %v1344 = vadd.f32 %v1034, %v1343
      %v1345 = vpop.f32.mrb[0].mxu0
      %1346 = vmatprep.mubr.f32.mxu0 0.0
      %1347 = vmatmul.mubr.f32.gmra.mrb[0].mxu0 %v1127
      %v1348 = vpop.f32.mrb[0].mxu0
      %v1349 = vadd.f32 %v1034, %v1348
      %v1350 = vpop.f32.mrb[0].mxu0
      %1351 = vmatprep.mubr.f32.mxu0 0.0
      %1352 = vmatmul.mubr.f32.gmra.mrb[0].mxu0 %v1130
      %v1353 = vpop.f32.mrb[0].mxu0
      %v1354 = vadd.f32 %v1034, %v1353
      %v1355 = vpop.f32.mrb[0].mxu0
      %1356 = vdwg.mxu0
      %v1357 = vmax.f32 %v1199, 0.0
      %v1358 = vmax.f32 %v1204, 0.0
      %v1359 = vmax.f32 %v1209, 0.0
      %v1360 = vmax.f32 %v1214, 0.0
      %v1361 = vmax.f32 %v1219, 0.0
      %v1362 = vmax.f32 %v1224, 0.0
      %v1363 = vmax.f32 %v1229, 0.0
      %v1364 = vmax.f32 %v1234, 0.0
      %v1365 = vmax.f32 %v1239, 0.0
      %v1366 = vmax.f32 %v1244, 0.0
      %v1367 = vmax.f32 %v1249, 0.0
      %v1368 = vmax.f32 %v1254, 0.0
      %v1369 = vmax.f32 %v1259, 0.0
      %v1370 = vmax.f32 %v1264, 0.0
      %v1371 = vmax.f32 %v1269, 0.0
      %v1372 = vmax.f32 %v1274, 0.0
      %v1373 = vmax.f32 %v1279, 0.0
      %v1374 = vmax.f32 %v1284, 0.0
      %v1375 = vmax.f32 %v1289, 0.0
      %v1376 = vmax.f32 %v1294, 0.0
      %v1377 = vmax.f32 %v1299, 0.0
      %v1378 = vmax.f32 %v1304, 0.0
      %v1379 = vmax.f32 %v1309, 0.0
      %v1380 = vmax.f32 %v1314, 0.0
      %v1381 = vmax.f32 %v1319, 0.0
      %v1382 = vmax.f32 %v1324, 0.0
      %v1383 = vmax.f32 %v1329, 0.0
      %v1384 = vmax.f32 %v1334, 0.0
      %v1385 = vmax.f32 %v1339, 0.0
      %v1386 = vmax.f32 %v1344, 0.0
      %v1387 = vmax.f32 %v1349, 0.0
      %v1388 = vmax.f32 %v1354, 0.0
      %v1389 = vld [vmem:[%s4] sm:$0xff]
      %v1390 = vld [vmem:[%s4 + $0x8] sm:$0xff]
      %v1391 = vld [vmem:[%s5] sm:$0x1]
      %v1393 = vlaneseq
      %v1394 = vshrl.u32 %v1393, 7
      %v1395 = vsub.s32 0, %v1394
      %v1396 = vrot.slane %v1391, %v1395
      %v1399 = vsel %vm321, %v1357, 0
      %v1402 = vsel %vm321, %v1358, 0
      %v1405 = vsel %vm321, %v1359, 0
      %v1408 = vsel %vm321, %v1360, 0
      %v1411 = vsel %vm321, %v1361, 0
      %v1414 = vsel %vm321, %v1362, 0
      %v1417 = vsel %vm321, %v1363, 0
      %v1420 = vsel %vm321, %v1364, 0
      %v1423 = vsel %vm321, %v1365, 0
      %v1426 = vsel %vm321, %v1366, 0
      %v1429 = vsel %vm321, %v1367, 0
      %v1432 = vsel %vm321, %v1368, 0
      %v1435 = vsel %vm321, %v1369, 0
      %v1438 = vsel %vm321, %v1370, 0
      %v1441 = vsel %vm321, %v1371, 0
      %v1444 = vsel %vm321, %v1372, 0
      %v1447 = vsel %vm321, %v1373, 0
      %v1450 = vsel %vm321, %v1374, 0
      %v1453 = vsel %vm321, %v1375, 0
      %v1456 = vsel %vm321, %v1376, 0
      %v1459 = vsel %vm321, %v1377, 0
      %v1462 = vsel %vm321, %v1378, 0
      %v1465 = vsel %vm321, %v1379, 0
      %v1468 = vsel %vm321, %v1380, 0
      %v1471 = vsel %vm321, %v1381, 0
      %v1474 = vsel %vm321, %v1382, 0
      %v1477 = vsel %vm321, %v1383, 0
      %v1480 = vsel %vm321, %v1384, 0
      %v1483 = vsel %vm321, %v1385, 0
      %v1486 = vsel %vm321, %v1386, 0
      %v1489 = vsel %vm321, %v1387, 0
      %v1492 = vsel %vm321, %v1388, 0
      %1494 = vmatprep.subr.mxu0 0.0
      %1495 = vmatpush1.msra.mxu0 %v1389
      %1496 = vmatprep.subr.mxu0 0.0
      %1497 = vmatpush1.msra.mxu0 %v1390
      %1498 = vmatprep.subr.mxu0 0.0
      %1499 = vmatpush1.msra.mxu0 0.0
      %1500 = vmatprep.subr.mxu0 0.0
      %1501 = vmatpush1.msra.mxu0 0.0
      %1502 = vmatprep.subr.mxu0 0.0
      %1503 = vmatpush1.msra.mxu0 0.0
      %1504 = vmatprep.subr.mxu0 0.0
      %1505 = vmatpush1.msra.mxu0 0.0
      %1506 = vmatprep.subr.mxu0 0.0
      %1507 = vmatpush1.msra.mxu0 0.0
      %1508 = vmatprep.subr.mxu0 0.0
      %1509 = vmatpush1.msra.mxu0 0.0
      %1510 = vmatprep.subr.mxu0 0.0
      %1511 = vmatpush1.msra.mxu0 0.0
      %1512 = vmatprep.subr.mxu0 0.0
      %1513 = vmatpush1.msra.mxu0 0.0
      %1514 = vmatprep.subr.mxu0 0.0
      %1515 = vmatpush1.msra.mxu0 0.0
      %1516 = vmatprep.subr.mxu0 0.0
      %1517 = vmatpush1.msra.mxu0 0.0
      %1518 = vmatprep.subr.mxu0 0.0
      %1519 = vmatpush1.msra.mxu0 0.0
      %1520 = vmatprep.subr.mxu0 0.0
      %1521 = vmatpush1.msra.mxu0 0.0
      %1522 = vmatprep.subr.mxu0 0.0
      %1523 = vmatpush1.msra.mxu0 0.0
      %1524 = vmatprep.subr.mxu0 0.0
      %1525 = vmatpush1.msra.mxu0 0.0
      %1526 = vmatprep.subr.mxu0 0.0
      %1527 = vmatpush1.msra.mxu0 0.0
      %1528 = vmatprep.subr.mxu0 0.0
      %1529 = vmatpush1.msra.mxu0 0.0
      %1530 = vmatprep.subr.mxu0 0.0
      %1531 = vmatpush1.msra.mxu0 0.0
      %1532 = vmatprep.subr.mxu0 0.0
      %1533 = vmatpush1.msra.mxu0 0.0
      %1534 = vmatprep.subr.mxu0 0.0
      %1535 = vmatpush1.msra.mxu0 0.0
      %1536 = vmatprep.subr.mxu0 0.0
      %1537 = vmatpush1.msra.mxu0 0.0
      %1538 = vmatprep.subr.mxu0 0.0
      %1539 = vmatpush1.msra.mxu0 0.0
      %1540 = vmatprep.subr.mxu0 0.0
      %1541 = vmatpush1.msra.mxu0 0.0
      %1542 = vmatprep.subr.mxu0 0.0
      %1543 = vmatpush1.msra.mxu0 0.0
      %1544 = vmatprep.subr.mxu0 0.0
      %1545 = vmatpush1.msra.mxu0 0.0
      %1546 = vmatprep.subr.mxu0 0.0
      %1547 = vmatpush1.msra.mxu0 0.0
      %1548 = vmatprep.subr.mxu0 0.0
      %1549 = vmatpush1.msra.mxu0 0.0
      %1550 = vmatprep.subr.mxu0 0.0
      %1551 = vmatpush1.msra.mxu0 0.0
      %1552 = vmatprep.subr.mxu0 0.0
      %1553 = vmatpush1.msra.mxu0 0.0
      %1554 = vmatprep.subr.mxu0 0.0
      %1555 = vmatpush1.msra.mxu0 0.0
      %1556 = vmatprep.subr.mxu0 0.0
      %1557 = vmatpush1.msra.mxu0 0.0
      %1558 = vmatprep.mubr.f32.mxu0 0.0
      %1559 = vmatmul.mubr.f32.gmra.mrb[0].mxu0 %v1399
      %v1560 = vpop.f32.mrb[0].mxu0
      %v1561 = vadd.f32 %v1396, %v1560
      %v1562 = vpop.f32.mrb[0].mxu0
      %1563 = vmatprep.mubr.f32.mxu0 0.0
      %1564 = vmatmul.mubr.f32.gmra.mrb[0].mxu0 %v1402
      %v1565 = vpop.f32.mrb[0].mxu0
      %v1566 = vadd.f32 %v1396, %v1565
      %v1567 = vpop.f32.mrb[0].mxu0
      %1568 = vmatprep.mubr.f32.mxu0 0.0
      %1569 = vmatmul.mubr.f32.gmra.mrb[0].mxu0 %v1405
      %v1570 = vpop.f32.mrb[0].mxu0
      %v1571 = vadd.f32 %v1396, %v1570
      %v1572 = vpop.f32.mrb[0].mxu0
      %1573 = vmatprep.mubr.f32.mxu0 0.0
      %1574 = vmatmul.mubr.f32.gmra.mrb[0].mxu0 %v1408
      %v1575 = vpop.f32.mrb[0].mxu0
      %v1576 = vadd.f32 %v1396, %v1575
      %v1577 = vpop.f32.mrb[0].mxu0
      %1578 = vmatprep.mubr.f32.mxu0 0.0
      %1579 = vmatmul.mubr.f32.gmra.mrb[0].mxu0 %v1411
      %v1580 = vpop.f32.mrb[0].mxu0
      %v1581 = vadd.f32 %v1396, %v1580
      %v1582 = vpop.f32.mrb[0].mxu0
      %1583 = vmatprep.mubr.f32.mxu0 0.0
      %1584 = vmatmul.mubr.f32.gmra.mrb[0].mxu0 %v1414
      %v1585 = vpop.f32.mrb[0].mxu0
      %v1586 = vadd.f32 %v1396, %v1585
      %v1587 = vpop.f32.mrb[0].mxu0
      %1588 = vmatprep.mubr.f32.mxu0 0.0
      %1589 = vmatmul.mubr.f32.gmra.mrb[0].mxu0 %v1417
      %v1590 = vpop.f32.mrb[0].mxu0
      %v1591 = vadd.f32 %v1396, %v1590
      %v1592 = vpop.f32.mrb[0].mxu0
      %1593 = vmatprep.mubr.f32.mxu0 0.0
      %1594 = vmatmul.mubr.f32.gmra.mrb[0].mxu0 %v1420
      %v1595 = vpop.f32.mrb[0].mxu0
      %v1596 = vadd.f32 %v1396, %v1595
      %v1597 = vpop.f32.mrb[0].mxu0
      %1598 = vmatprep.mubr.f32.mxu0 0.0
      %1599 = vmatmul.mubr.f32.gmra.mrb[0].mxu0 %v1423
      %v1600 = vpop.f32.mrb[0].mxu0
      %v1601 = vadd.f32 %v1396, %v1600
      %v1602 = vpop.f32.mrb[0].mxu0
      %1603 = vmatprep.mubr.f32.mxu0 0.0
      %1604 = vmatmul.mubr.f32.gmra.mrb[0].mxu0 %v1426
      %v1605 = vpop.f32.mrb[0].mxu0
      %v1606 = vadd.f32 %v1396, %v1605
      %v1607 = vpop.f32.mrb[0].mxu0
      %1608 = vmatprep.mubr.f32.mxu0 0.0
      %1609 = vmatmul.mubr.f32.gmra.mrb[0].mxu0 %v1429
      %v1610 = vpop.f32.mrb[0].mxu0
      %v1611 = vadd.f32 %v1396, %v1610
      %v1612 = vpop.f32.mrb[0].mxu0
      %1613 = vmatprep.mubr.f32.mxu0 0.0
      %1614 = vmatmul.mubr.f32.gmra.mrb[0].mxu0 %v1432
      %v1615 = vpop.f32.mrb[0].mxu0
      %v1616 = vadd.f32 %v1396, %v1615
      %v1617 = vpop.f32.mrb[0].mxu0
      %1618 = vmatprep.mubr.f32.mxu0 0.0
      %1619 = vmatmul.mubr.f32.gmra.mrb[0].mxu0 %v1435
      %v1620 = vpop.f32.mrb[0].mxu0
      %v1621 = vadd.f32 %v1396, %v1620
      %v1622 = vpop.f32.mrb[0].mxu0
      %1623 = vmatprep.mubr.f32.mxu0 0.0
      %1624 = vmatmul.mubr.f32.gmra.mrb[0].mxu0 %v1438
      %v1625 = vpop.f32.mrb[0].mxu0
      %v1626 = vadd.f32 %v1396, %v1625
      %v1627 = vpop.f32.mrb[0].mxu0
      %1628 = vmatprep.mubr.f32.mxu0 0.0
      %1629 = vmatmul.mubr.f32.gmra.mrb[0].mxu0 %v1441
      %v1630 = vpop.f32.mrb[0].mxu0
      %v1631 = vadd.f32 %v1396, %v1630
      %v1632 = vpop.f32.mrb[0].mxu0
      %1633 = vmatprep.mubr.f32.mxu0 0.0
      %1634 = vmatmul.mubr.f32.gmra.mrb[0].mxu0 %v1444
      %v1635 = vpop.f32.mrb[0].mxu0
      %v1636 = vadd.f32 %v1396, %v1635
      %v1637 = vpop.f32.mrb[0].mxu0
      %1638 = vmatprep.mubr.f32.mxu0 0.0
      %1639 = vmatmul.mubr.f32.gmra.mrb[0].mxu0 %v1447
      %v1640 = vpop.f32.mrb[0].mxu0
      %v1641 = vadd.f32 %v1396, %v1640
      %v1642 = vpop.f32.mrb[0].mxu0
      %1643 = vmatprep.mubr.f32.mxu0 0.0
      %1644 = vmatmul.mubr.f32.gmra.mrb[0].mxu0 %v1450
      %v1645 = vpop.f32.mrb[0].mxu0
      %v1646 = vadd.f32 %v1396, %v1645
      %v1647 = vpop.f32.mrb[0].mxu0
      %1648 = vmatprep.mubr.f32.mxu0 0.0
      %1649 = vmatmul.mubr.f32.gmra.mrb[0].mxu0 %v1453
      %v1650 = vpop.f32.mrb[0].mxu0
      %v1651 = vadd.f32 %v1396, %v1650
      %v1652 = vpop.f32.mrb[0].mxu0
      %1653 = vmatprep.mubr.f32.mxu0 0.0
      %1654 = vmatmul.mubr.f32.gmra.mrb[0].mxu0 %v1456
      %v1655 = vpop.f32.mrb[0].mxu0
      %v1656 = vadd.f32 %v1396, %v1655
      %v1657 = vpop.f32.mrb[0].mxu0
      %1658 = vmatprep.mubr.f32.mxu0 0.0
      %1659 = vmatmul.mubr.f32.gmra.mrb[0].mxu0 %v1459
      %v1660 = vpop.f32.mrb[0].mxu0
      %v1661 = vadd.f32 %v1396, %v1660
      %v1662 = vpop.f32.mrb[0].mxu0
      %1663 = vmatprep.mubr.f32.mxu0 0.0
      %1664 = vmatmul.mubr.f32.gmra.mrb[0].mxu0 %v1462
      %v1665 = vpop.f32.mrb[0].mxu0
      %v1666 = vadd.f32 %v1396, %v1665
      %v1667 = vpop.f32.mrb[0].mxu0
      %1668 = vmatprep.mubr.f32.mxu0 0.0
      %1669 = vmatmul.mubr.f32.gmra.mrb[0].mxu0 %v1465
      %v1670 = vpop.f32.mrb[0].mxu0
      %v1671 = vadd.f32 %v1396, %v1670
      %v1672 = vpop.f32.mrb[0].mxu0
      %1673 = vmatprep.mubr.f32.mxu0 0.0
      %1674 = vmatmul.mubr.f32.gmra.mrb[0].mxu0 %v1468
      %v1675 = vpop.f32.mrb[0].mxu0
      %v1676 = vadd.f32 %v1396, %v1675
      %v1677 = vpop.f32.mrb[0].mxu0
      %1678 = vmatprep.mubr.f32.mxu0 0.0
      %1679 = vmatmul.mubr.f32.gmra.mrb[0].mxu0 %v1471
      %v1680 = vpop.f32.mrb[0].mxu0
      %v1681 = vadd.f32 %v1396, %v1680
      %v1682 = vpop.f32.mrb[0].mxu0
      %1683 = vmatprep.mubr.f32.mxu0 0.0
      %1684 = vmatmul.mubr.f32.gmra.mrb[0].mxu0 %v1474
      %v1685 = vpop.f32.mrb[0].mxu0
      %v1686 = vadd.f32 %v1396, %v1685
      %v1687 = vpop.f32.mrb[0].mxu0
      %1688 = vmatprep.mubr.f32.mxu0 0.0
      %1689 = vmatmul.mubr.f32.gmra.mrb[0].mxu0 %v1477
      %v1690 = vpop.f32.mrb[0].mxu0
      %v1691 = vadd.f32 %v1396, %v1690
      %v1692 = vpop.f32.mrb[0].mxu0
      %1693 = vmatprep.mubr.f32.mxu0 0.0
      %1694 = vmatmul.mubr.f32.gmra.mrb[0].mxu0 %v1480
      %v1695 = vpop.f32.mrb[0].mxu0
      %v1696 = vadd.f32 %v1396, %v1695
      %v1697 = vpop.f32.mrb[0].mxu0
      %1698 = vmatprep.mubr.f32.mxu0 0.0
      %1699 = vmatmul.mubr.f32.gmra.mrb[0].mxu0 %v1483
      %v1700 = vpop.f32.mrb[0].mxu0
      %v1701 = vadd.f32 %v1396, %v1700
      %v1702 = vpop.f32.mrb[0].mxu0
      %1703 = vmatprep.mubr.f32.mxu0 0.0
      %1704 = vmatmul.mubr.f32.gmra.mrb[0].mxu0 %v1486
      %v1705 = vpop.f32.mrb[0].mxu0
      %v1706 = vadd.f32 %v1396, %v1705
      %v1707 = vpop.f32.mrb[0].mxu0
      %1708 = vmatprep.mubr.f32.mxu0 0.0
      %1709 = vmatmul.mubr.f32.gmra.mrb[0].mxu0 %v1489
      %v1710 = vpop.f32.mrb[0].mxu0
      %v1711 = vadd.f32 %v1396, %v1710
      %v1712 = vpop.f32.mrb[0].mxu0
      %1713 = vmatprep.mubr.f32.mxu0 0.0
      %1714 = vmatmul.mubr.f32.gmra.mrb[0].mxu0 %v1492
      %v1715 = vpop.f32.mrb[0].mxu0
      %v1716 = vadd.f32 %v1396, %v1715
      %v1717 = vpop.f32.mrb[0].mxu0
      %1718 = vdwg.mxu0
      %vm1719 = vcmask 15360
      %1720 = vst.msk [vmem:[%s253] sm:$0xff] %vm1719, %v1561
      %1721 = vst.msk [vmem:[%s253 + $0x8] sm:$0xff] %vm1719, %v1566
      %1722 = vst.msk [vmem:[%s253 + $0x10] sm:$0xff] %vm1719, %v1571
      %1723 = vst.msk [vmem:[%s253 + $0x18] sm:$0xff] %vm1719, %v1576
      %1724 = vst.msk [vmem:[%s253 + $0x20] sm:$0xff] %vm1719, %v1581
      %1725 = vst.msk [vmem:[%s253 + $0x28] sm:$0xff] %vm1719, %v1586
      %1726 = vst.msk [vmem:[%s253 + $0x30] sm:$0xff] %vm1719, %v1591
      %1727 = vst.msk [vmem:[%s253 + $0x38] sm:$0xff] %vm1719, %v1596
      %1728 = vst.msk [vmem:[%s253 + $0x40] sm:$0xff] %vm1719, %v1601
      %1729 = vst.msk [vmem:[%s253 + $0x48] sm:$0xff] %vm1719, %v1606
      %1730 = vst.msk [vmem:[%s253 + $0x50] sm:$0xff] %vm1719, %v1611
      %1731 = vst.msk [vmem:[%s253 + $0x58] sm:$0xff] %vm1719, %v1616
      %1732 = vst.msk [vmem:[%s253 + $0x60] sm:$0xff] %vm1719, %v1621
      %1733 = vst.msk [vmem:[%s253 + $0x68] sm:$0xff] %vm1719, %v1626
      %1734 = vst.msk [vmem:[%s253 + $0x70] sm:$0xff] %vm1719, %v1631
      %1735 = vst.msk [vmem:[%s253 + $0x78] sm:$0xff] %vm1719, %v1636
      %1736 = vst.msk [vmem:[%s253 + $0x80] sm:$0xff] %vm1719, %v1641
      %1737 = vst.msk [vmem:[%s253 + $0x88] sm:$0xff] %vm1719, %v1646
      %1738 = vst.msk [vmem:[%s253 + $0x90] sm:$0xff] %vm1719, %v1651
      %1739 = vst.msk [vmem:[%s253 + $0x98] sm:$0xff] %vm1719, %v1656
      %1740 = vst.msk [vmem:[%s253 + $0xa0] sm:$0xff] %vm1719, %v1661
      %1741 = vst.msk [vmem:[%s253 + $0xa8] sm:$0xff] %vm1719, %v1666
      %1742 = vst.msk [vmem:[%s253 + $0xb0] sm:$0xff] %vm1719, %v1671
      %1743 = vst.msk [vmem:[%s253 + $0xb8] sm:$0xff] %vm1719, %v1676
      %1744 = vst.msk [vmem:[%s253 + $0xc0] sm:$0xff] %vm1719, %v1681
      %1745 = vst.msk [vmem:[%s253 + $0xc8] sm:$0xff] %vm1719, %v1686
      %1746 = vst.msk [vmem:[%s253 + $0xd0] sm:$0xff] %vm1719, %v1691
      %1747 = vst.msk [vmem:[%s253 + $0xd8] sm:$0xff] %vm1719, %v1696
      %1748 = vst.msk [vmem:[%s253 + $0xe0] sm:$0xff] %vm1719, %v1701
      %1749 = vst.msk [vmem:[%s253 + $0xe8] sm:$0xff] %vm1719, %v1706
      %1750 = vst.msk [vmem:[%s253 + $0xf0] sm:$0xff] %vm1719, %v1711
      %1751 = vst.msk [vmem:[%s253 + $0xf8] sm:$0xff] %vm1719, %v1716
      %s1752 = smul.u32 32, %s17
      %p1753 = scmp.lt.s32.totalorder %s1752, 63
      %s1754 = scalar_select %p1753, %s1752, 63
      %s1755 = smul.addr %s1754, 8
      %s1756 = scalar_lea.vmem %s6, %s1755
      // Predicated region
      $region45: #{attention_model_forward.1} parent=43 // pred_check
        %p1757 = pneg %p166
      $region46: #{attention_model_forward.1} parent=43 // pred_check_branch
        %1759 = sbr.rel (%p1757) target = $region48
      $region47: #{attention_model_forward.1} parent=43 // pred_region
        %s1760 = smul.u32 32, %s17
      $region48: #{attention_model_forward.1} parent=43 // pred_fallthru
        _
    $region44: #{attention_model_forward.1} parent=5 // pred_fallthru
      _
    %p1761 = scmp.le.s32.totalorder 2, %s12
    // Predicated region
    $region49: #{attention_model_forward.1} parent=5 // pred_check
      %p1762 = pneg %p1761
    $region50: #{attention_model_forward.1} parent=5 // pred_check_branch
      %1764 = sbr.rel (%p1762) target = $region52
    $region51: #{attention_model_forward.1} parent=5 // pred_region
      %s1765 = ssub.s32 %s12, 2
      // Predicated region
      $region53: #{attention_model_forward.1} parent=51 // pred_check
        %p1766 = pneg %p172
      $region54: #{attention_model_forward.1} parent=51 // pred_check_branch
        %1768 = sbr.rel (%p1766) target = $region56
      $region55: #{attention_model_forward.1} parent=51 // pred_region
        %s1769 = smul.u32 32, %s18
        %p1770 = scmp.lt.s32.totalorder %s1769, 63
        %s1771 = scalar_select %p1770, %s1769, 63
        %s1772 = smul.addr %s1771, 8
        %s1773 = scalar_lea.vmem %s6, %s1772
      $region56: #{attention_model_forward.1} parent=51 // pred_fallthru
        _
    $region52: #{attention_model_forward.1} parent=5 // pred_fallthru
      _
  $region6: #{attention_model_forward.1} parent=0 // loop_footer
    %s16 = sadd.s32 1, %s12
  $region7: #{attention_model_forward.1} parent=0 // loop_footer_branch
    %11 = sbr.rel target = $region3
  $region8: #{attention_model_forward.1} parent=0 // loop_exit
    _

</llo_original>
